<compile_context>
chip_gen: v7x
topology: tpu7x:2x2x1
jax: 0.10.0
libtpu: 0.0.40
codegen_flags: <defaults>
</compile_context>

<pallas_src>
import jax
import jax.numpy as jnp
from jax.experimental import pallas as pl
from jax.experimental.pallas import tpu as pltpu


def _round_up(x, m):
    return ((x + m - 1) // m) * m


# ---------------------------------------------------------------------------
# Fused DE kernel: selection net + Gumbel softmax + expert MLPs + mixture + SSE
# ---------------------------------------------------------------------------

def _de_fused_kernel(t_ref, s_ref, g_ref, selw_ref, selb_ref,
                     w1_ref, b1_ref, w2_ref, b2_ref, out_ref):
    BT, S, Ht = t_ref.shape
    Hs = s_ref.shape[-1]
    E = selw_ref.shape[-1]
    EHm = w1_ref.shape[-1]
    Hm = EHm // E
    Nt = BT * S

    t2 = t_ref[...].reshape(Nt, Ht)                     # f32 teacher hidden
    x2 = s_ref[...].reshape(Nt, Hs)                     # bf16 student hidden

    # --- selection_net: Linear(Ht -> E) + Softmax(dim=1) (sequence axis) ------
    logits = jnp.dot(t2.astype(jnp.bfloat16), selw_ref[...],
                     preferred_element_type=jnp.float32) + selb_ref[...]
    l3 = logits.reshape(BT, S, E)
    m = jnp.max(l3, axis=1, keepdims=True)
    p3 = jnp.exp(l3 - m)
    p3 = p3 / jnp.sum(p3, axis=1, keepdims=True)        # softmax over seq axis

    # --- sharp Gumbel softmax over experts (temperature 0.01) ----------------
    z = (jnp.log(p3 + 1e-10) + g_ref[...]) / 0.01
    zm = jnp.max(z, axis=-1, keepdims=True)
    ze = jnp.exp(z - zm)
    sel3 = ze / jnp.sum(ze, axis=-1, keepdims=True)
    sel = sel3.reshape(Nt, E)                           # [Nt, E] f32

    # --- expert MLPs: fused first layer, sel-scaled fused second layer -------
    h = jnp.dot(x2, w1_ref[...], preferred_element_type=jnp.float32) + b1_ref[...]
    h = jnp.maximum(h, 0.0)                             # ReLU in f32, [Nt, E*Hm]
    parts = [h[:, e * Hm:(e + 1) * Hm] * sel[:, e:e + 1] for e in range(E)]
    hs = jnp.concatenate(parts, axis=1).astype(jnp.bfloat16)   # [Nt, E*Hm]
    mix = jnp.dot(hs, w2_ref[...], preferred_element_type=jnp.float32)
    mix = mix + jnp.dot(sel, b2_ref[...], preferred_element_type=jnp.float32)

    d = t2 - mix
    partial = jnp.sum(d * d)                            # per-tile SSE
    out_ref[...] = jnp.zeros((1, 8, 128), jnp.float32) + partial   # lane-dense


def _pick_bt(B, S, Ht, Hs, E, target_bytes=2 * 1024 * 1024):
    """Largest divisor of B whose input block stays around target_bytes."""
    per_row = S * (Ht * 4 + Hs * 2 + E * 4)   # teacher f32 + student bf16 + gumbel f32
    bt = 1
    for d in range(1, B + 1):
        if B % d == 0 and d * per_row <= target_bytes:
            bt = d
    return bt


def de_fused(teacher_h, student_h_bf16, gumbel, prep, *, bt=None):
    """Returns DE = sum((teacher_h - mixture_of_experts(student_h))**2)."""
    B, S, Ht = teacher_h.shape
    Hs = student_h_bf16.shape[-1]
    E = prep["sel_w"].shape[-1]
    EHm = prep["w1cat"].shape[-1]
    if bt is None:
        bt = _pick_bt(B, S, Ht, Hs, E)
    if B % bt != 0:
        bt = B
    n_tiles = B // bt

    partials = pl.pallas_call(
        _de_fused_kernel,
        out_shape=jax.ShapeDtypeStruct((n_tiles, 8, 128), jnp.float32),
        grid=(n_tiles,),
        in_specs=[
            pl.BlockSpec((bt, S, Ht), lambda i: (i, 0, 0)),   # teacher f32
            pl.BlockSpec((bt, S, Hs), lambda i: (i, 0, 0)),   # student bf16
            pl.BlockSpec((bt, S, E), lambda i: (i, 0, 0)),    # gumbel  f32
            pl.BlockSpec((Ht, E), lambda i: (0, 0)),          # sel_w   bf16
            pl.BlockSpec((1, E), lambda i: (0, 0)),           # sel_b   f32
            pl.BlockSpec((Hs, EHm), lambda i: (0, 0)),        # w1cat   bf16
            pl.BlockSpec((1, EHm), lambda i: (0, 0)),         # b1cat   f32
            pl.BlockSpec((EHm, Ht), lambda i: (0, 0)),        # w2flat  bf16
            pl.BlockSpec((E, Ht), lambda i: (0, 0)),          # b2mat   f32
        ],
        out_specs=pl.BlockSpec((1, 8, 128), lambda i: (i, 0, 0)),
        compiler_params=pltpu.CompilerParams(
            dimension_semantics=("parallel",),          # per-tile partials -> 2 TCs on v7x
            vmem_limit_bytes=48 * 1024 * 1024),
    )(teacher_h, student_h_bf16, gumbel,
      prep["sel_w"], prep["sel_b"], prep["w1cat"], prep["b1cat"],
      prep["w2"], prep["b2"])
    return jnp.sum(partials[:, 0, 0])


# ---------------------------------------------------------------------------
# Vanilla KD (KL + CE) with vocab tiling and in-kernel scalar reduction
# ---------------------------------------------------------------------------

def _kd_kernel(lab_ref, s_ref, t_ref, out_ref,
               mt, zt, wt, ws, ms, zs, pick):
    j = pl.program_id(0)
    nv = pl.num_programs(0)
    TV = s_ref.shape[1]

    @pl.when(j == 0)
    def _():
        mt[...] = jnp.full_like(mt, -jnp.inf)
        ms[...] = jnp.full_like(ms, -jnp.inf)
        zt[...] = jnp.zeros_like(zt)
        zs[...] = jnp.zeros_like(zs)
        wt[...] = jnp.zeros_like(wt)
        ws[...] = jnp.zeros_like(ws)
        pick[...] = jnp.zeros_like(pick)

    s = s_ref[...].astype(jnp.float32)                  # [B, TV]
    t = t_ref[...].astype(jnp.float32)

    # online teacher stats: max, sum exp, sum exp*t, sum exp*s
    mt_new = jnp.maximum(mt[...], jnp.max(t, axis=1, keepdims=True))
    at = jnp.exp(mt[...] - mt_new)
    pt = jnp.exp(t - mt_new)
    zt[...] = at * zt[...] + jnp.sum(pt, axis=1, keepdims=True)
    wt[...] = at * wt[...] + jnp.sum(pt * t, axis=1, keepdims=True)
    ws[...] = at * ws[...] + jnp.sum(pt * s, axis=1, keepdims=True)
    mt[...] = mt_new

    # online student logsumexp
    ms_new = jnp.maximum(ms[...], jnp.max(s, axis=1, keepdims=True))
    a_s = jnp.exp(ms[...] - ms_new)
    zs[...] = a_s * zs[...] + jnp.sum(jnp.exp(s - ms_new), axis=1, keepdims=True)
    ms[...] = ms_new

    # CE: pick the label logit if it lives in this vocab tile
    labels = lab_ref[...]                               # [B, 1] int32
    col = jax.lax.broadcasted_iota(jnp.int32, s.shape, 1) + j * TV
    pick[...] += jnp.sum(jnp.where(col == labels, s, 0.0), axis=1, keepdims=True)

    @pl.when(j == nv - 1)
    def _():
        B = s.shape[0]
        lse_t = mt[...] + jnp.log(zt[...])
        lse_s = ms[...] + jnp.log(zs[...])
        inv_zt = 1.0 / zt[...]
        kd_rows = (wt[...] - ws[...]) * inv_zt - lse_t + lse_s   # row-wise KL
        ce_rows = lse_s - pick[...]                              # row-wise CE
        kd_mean = jnp.sum(kd_rows) * (1.0 / B)                   # KLDiv 'batchmean'
        ce_mean = jnp.sum(ce_rows) * (1.0 / B)
        T = 1.0
        alpha = 0.7
        out_ref[0, 0] = alpha * kd_mean * T * T + (1.0 - alpha) * ce_mean


def _pick_tv(B, V, target=2048, vmem_budget=32 * 1024 * 1024):
    tv = min(target, _round_up(V, 128))
    max_tv = max(128, ((vmem_budget // (16 * B)) // 128) * 128)
    return max(128, min(tv, max_tv))


def vanilla_kd_loss(student_logits, teacher_logits, labels, *, tv=None):
    B, V = student_logits.shape
    if tv is None:
        tv = _pick_tv(B, V)
    Vp = _round_up(V, tv)
    if Vp != V:
        # pad vocab tail with a very negative (finite) value: contributes 0 weight
        pad_s = jnp.full((B, Vp - V), -1e30, student_logits.dtype)
        pad_t = jnp.full((B, Vp - V), -1e30, teacher_logits.dtype)
        student_logits = jnp.concatenate([student_logits, pad_s], axis=1)
        teacher_logits = jnp.concatenate([teacher_logits, pad_t], axis=1)
    labels_col = labels.reshape(B, 1).astype(jnp.int32)

    out = pl.pallas_call(
        _kd_kernel,
        out_shape=jax.ShapeDtypeStruct((1, 1), jnp.float32),
        grid=(Vp // tv,),
        in_specs=[
            pl.BlockSpec((B, 1), lambda j: (0, 0)),
            pl.BlockSpec((B, tv), lambda j: (0, j)),
            pl.BlockSpec((B, tv), lambda j: (0, j)),
        ],
        out_specs=pl.BlockSpec((1, 1), lambda j: (0, 0)),
        scratch_shapes=[pltpu.VMEM((B, 1), jnp.float32) for _ in range(7)],
        compiler_params=pltpu.CompilerParams(
            dimension_semantics=("arbitrary",),
            vmem_limit_bytes=48 * 1024 * 1024),
    )(labels_col, student_logits, teacher_logits)
    return out[0, 0]


# ---------------------------------------------------------------------------
# SRS_KD (kd_method='de') forward
# ---------------------------------------------------------------------------

def de_loss(prep, key, student_logits, teacher_logits, labels,
            student_h0, teacher_h0):
    B, S, _ = teacher_h0.shape
    E = prep["sel_w"].shape[-1]
    # TODO(synk): num_experts == 1 path (selection_result = 1.0) not implemented;
    # this module instance uses the Gumbel mixture path (num_experts > 1).
    gumbel = jax.random.gumbel(key, (B, S, E), jnp.float32)     # torch Gumbel(0,1)
    DE = de_fused(teacher_h0, student_h0.astype(jnp.bfloat16), gumbel, prep)
    kd = vanilla_kd_loss(student_logits, teacher_logits, labels)
    return 0.001 * DE + kd


def srs_kd_forward(prep, key, student_logits, teacher_logits, labels,
                   student_hiddens, teacher_hiddens, onecall=False):
    # kd_method == 'de'  ->  transform_block is NOT applied (matches torch forward).
    if onecall:
        return student_logits, None
    loss = de_loss(prep, key, student_logits, teacher_logits, labels,
                   student_hiddens[0], teacher_hiddens[0])
    return student_logits, loss


# ---------------------------------------------------------------------------
# Parameters: PyTorch-Linear-style init + host-side kernel prep (bf16 pre-cast)
# ---------------------------------------------------------------------------

def _linear_init(key, fan_in, fan_out):
    kw, kb = jax.random.split(key)
    bound = 1.0 / jnp.sqrt(float(fan_in))
    w = jax.random.uniform(kw, (fan_in, fan_out), jnp.float32, -bound, bound)
    b = jax.random.uniform(kb, (fan_out,), jnp.float32, -bound, bound)
    return w, b


def init_params(key, Hs, Ht, E):
    Hm = (Hs + Ht) // 2
    keys = jax.random.split(key, 2 * E + 1)
    w1s, b1s, w2s, b2s = [], [], [], []
    for e in range(E):
        w1, b1 = _linear_init(keys[2 * e], Hs, Hm)
        w2, b2 = _linear_init(keys[2 * e + 1], Hm, Ht)
        w1s.append(w1); b1s.append(b1); w2s.append(w2); b2s.append(b2)
    sel_w, sel_b = _linear_init(keys[-1], Ht, E)
    return {
        "w1cat": jnp.concatenate(w1s, axis=1),               # [Hs, E*Hm]
        "b1cat": jnp.concatenate(b1s, axis=0).reshape(1, E * Hm),
        "w2flat": jnp.concatenate(w2s, axis=0),               # [E*Hm, Ht]
        "b2mat": jnp.stack(b2s),                              # [E, Ht]
        "sel_w": sel_w,                                       # [Ht, E]
        "sel_b": sel_b.reshape(1, E),                         # [1, E]
    }


def prepare_de_params(params):
    """Pre-cast matmul weights to bf16 on the host; biases stay f32."""
    return {
        "sel_w": params["sel_w"].astype(jnp.bfloat16),
        "sel_b": params["sel_b"],
        "w1cat": params["w1cat"].astype(jnp.bfloat16),
        "b1cat": params["b1cat"],
        "w2": params["w2flat"].astype(jnp.bfloat16),
        "b2": params["b2mat"],
    }


# ---------------------------------------------------------------------------
# Pure-JAX DE reference (mirrors the kernel's bf16 matmul operands)
# ---------------------------------------------------------------------------

def _de_reference(teacher_h, student_h_bf16, gumbel, prep):
    B, S, Ht = teacher_h.shape
    Hs = student_h_bf16.shape[-1]
    E = prep["sel_w"].shape[-1]
    Hm = prep["w1cat"].shape[-1] // E
    t2 = teacher_h.reshape(-1, Ht)
    x2 = student_h_bf16.reshape(-1, Hs)
    logits = jnp.dot(t2.astype(jnp.bfloat16), prep["sel_w"],
                     preferred_element_type=jnp.float32) + prep["sel_b"]
    p = jax.nn.softmax(logits.reshape(B, S, E), axis=1)
    z = (jnp.log(p + 1e-10) + gumbel) / 0.01
    sel = jax.nn.softmax(z, axis=-1).reshape(-1, E)
    h = jnp.maximum(jnp.dot(x2, prep["w1cat"],
                            preferred_element_type=jnp.float32) + prep["b1cat"], 0.0)
    hs = jnp.concatenate([h[:, e * Hm:(e + 1) * Hm] * sel[:, e:e + 1]
                          for e in range(E)], axis=1).astype(jnp.bfloat16)
    mix = jnp.dot(hs, prep["w2"], preferred_element_type=jnp.float32)
    mix = mix + jnp.dot(sel, prep["b2"], preferred_element_type=jnp.float32)
    d = t2 - mix
    return jnp.sum(d * d)


if __name__ == "__main__":
    B, S, V = 8, 16, 512          # batch, seq, vocab
    Hs, Ht, E = 32, 64, 3         # student hidden, teacher hidden, num_experts

    root = jax.random.PRNGKey(0)
    k_par, k_sl, k_tl, k_lab, k_sh, k_th, k_g = jax.random.split(root, 7)

    params = init_params(k_par, Hs, Ht, E)
    prep = prepare_de_params(params)

    # Stand-ins for teacher_model(x) / student_model(x) outputs (see TODO above).
    student_logits = jax.random.normal(k_sl, (B, V), jnp.float32)
    teacher_logits = jax.random.normal(k_tl, (B, V), jnp.float32)
    labels = jax.random.randint(k_lab, (B,), 0, V, jnp.int32)
    student_hiddens = [jax.random.normal(k_sh, (B, S, Hs), jnp.float32)]
    teacher_hiddens = [jax.random.normal(k_th, (B, S, Ht), jnp.float32)]

    logits_out, loss = srs_kd_forward(prep, k_g, student_logits, teacher_logits,
                                      labels, student_hiddens, teacher_hiddens,
                                      onecall=False)
    loss = jax.block_until_ready(loss)

    # --- cross-check vanilla KD/CE kernel against a pure-JAX reference -------
    kd_kernel_val = jax.block_until_ready(
        vanilla_kd_loss(student_logits, teacher_logits, labels))
    log_ps = jax.nn.log_softmax(student_logits, axis=1)
    p_t = jax.nn.softmax(teacher_logits, axis=1)
    log_pt = jax.nn.log_softmax(teacher_logits, axis=1)
    kd_ref = jnp.sum(p_t * (log_pt - log_ps)) / B
    ce_ref = jnp.mean(jax.nn.logsumexp(student_logits, axis=1)
                      - student_logits[jnp.arange(B), labels])
    ref = 0.7 * kd_ref + 0.3 * ce_ref
    assert jnp.allclose(kd_kernel_val, ref, rtol=1e-3, atol=1e-3)

    # --- cross-check fused DE kernel against a pure-JAX reference ------------
    gumbel = jax.random.gumbel(k_g, (B, S, E), jnp.float32)
    de_kernel_val = jax.block_until_ready(
        de_fused(teacher_hiddens[0], student_hiddens[0].astype(jnp.bfloat16),
                 gumbel, prep))
    de_ref = _de_reference(teacher_hiddens[0],
                           student_hiddens[0].astype(jnp.bfloat16), gumbel, prep)
    assert jnp.allclose(de_kernel_val, de_ref, rtol=2e-2, atol=1e-2)

    assert logits_out.shape == (B, V) and loss.shape == ()
    assert bool(jnp.isfinite(loss))
    print("KERNEL_OK")
</pallas_src>

<mosaic_0001>
module attributes {stable_mosaic.version = 11 : i64} {
  func.func @_de_fused_kernel(%arg0: i32, %arg1: memref<8x16x64xf32, #tpu.memory_space<vmem>>, %arg2: memref<8x16x32xbf16, #tpu.memory_space<vmem>>, %arg3: memref<8x16x3xf32, #tpu.memory_space<vmem>>, %arg4: memref<64x3xbf16, #tpu.memory_space<vmem>>, %arg5: memref<1x3xf32, #tpu.memory_space<vmem>>, %arg6: memref<32x144xbf16, #tpu.memory_space<vmem>>, %arg7: memref<1x144xf32, #tpu.memory_space<vmem>>, %arg8: memref<144x64xbf16, #tpu.memory_space<vmem>>, %arg9: memref<3x64xf32, #tpu.memory_space<vmem>>, %arg10: memref<1x8x128xf32, #tpu.memory_space<vmem>>) attributes {dimension_semantics = [#tpu.dimension_semantics<parallel>], iteration_bounds = array<i64: 1>, scalar_prefetch = 0 : i64, scratch_operands = 0 : i64, tpu.core_type = #tpu.core_type<tc>, window_params = [{transform_indices = @transform_0, window_bounds = array<i64: 8, 16, 64>}, {transform_indices = @transform_1, window_bounds = array<i64: 8, 16, 32>}, {transform_indices = @transform_2, window_bounds = array<i64: 8, 16, 3>}, {pipeline_mode = #tpu.pipeline_mode<synchronous>, transform_indices = @transform_3, window_bounds = array<i64: 64, 3>}, {pipeline_mode = #tpu.pipeline_mode<synchronous>, transform_indices = @transform_4, window_bounds = array<i64: 1, 3>}, {pipeline_mode = #tpu.pipeline_mode<synchronous>, transform_indices = @transform_5, window_bounds = array<i64: 32, 144>}, {pipeline_mode = #tpu.pipeline_mode<synchronous>, transform_indices = @transform_6, window_bounds = array<i64: 1, 144>}, {pipeline_mode = #tpu.pipeline_mode<synchronous>, transform_indices = @transform_7, window_bounds = array<i64: 144, 64>}, {pipeline_mode = #tpu.pipeline_mode<synchronous>, transform_indices = @transform_8, window_bounds = array<i64: 3, 64>}, {transform_indices = @transform_9, window_bounds = array<i64: 1, 8, 128>}]} {
    %c0 = arith.constant 0 : index
    %c0_0 = arith.constant 0 : index
    %c0_1 = arith.constant 0 : index
    %0 = vector.load %arg1[%c0, %c0_0, %c0_1] : memref<8x16x64xf32, #tpu.memory_space<vmem>>, vector<8x16x64xf32>
    %1 = vector.shape_cast %0 : vector<8x16x64xf32> to vector<128x64xf32>
    %c0_2 = arith.constant 0 : index
    %c0_3 = arith.constant 0 : index
    %c0_4 = arith.constant 0 : index
    %2 = vector.load %arg2[%c0_2, %c0_3, %c0_4] : memref<8x16x32xbf16, #tpu.memory_space<vmem>>, vector<8x16x32xbf16>
    %3 = vector.shape_cast %2 : vector<8x16x32xbf16> to vector<128x32xbf16>
    %4 = arith.truncf %1 : vector<128x64xf32> to vector<128x64xbf16>
    %c0_5 = arith.constant 0 : index
    %c0_6 = arith.constant 0 : index
    %5 = vector.load %arg4[%c0_5, %c0_6] : memref<64x3xbf16, #tpu.memory_space<vmem>>, vector<64x3xbf16>
    %cst = arith.constant dense<0.000000e+00> : vector<128x3xf32>
    %6 = tpu.matmul %4, %5, %cst {dimension_numbers = #tpu.dot_dimension_numbers<[1], [0], [0], [1], [0, 0, 1, 1], [], []>} : vector<128x64xbf16>, vector<64x3xbf16>, vector<128x3xf32> -> vector<128x3xf32>
    %c0_7 = arith.constant 0 : index
    %c0_8 = arith.constant 0 : index
    %7 = vector.load %arg5[%c0_7, %c0_8] : memref<1x3xf32, #tpu.memory_space<vmem>>, vector<1x3xf32>
    %8 = vector.broadcast %7 : vector<1x3xf32> to vector<128x3xf32>
    %9 = arith.addf %6, %8 : vector<128x3xf32>
    %10 = vector.shape_cast %9 : vector<128x3xf32> to vector<8x16x3xf32>
    %cst_9 = arith.constant dense<0xFF800000> : vector<8x3xf32>
    %11 = vector.multi_reduction <maximumf>, %10, %cst_9 [1] : vector<8x16x3xf32> to vector<8x3xf32>
    %12 = vector.shape_cast %11 : vector<8x3xf32> to vector<8x1x3xf32>
    %13 = vector.broadcast %12 : vector<8x1x3xf32> to vector<8x16x3xf32>
    %14 = arith.subf %10, %13 : vector<8x16x3xf32>
    %15 = math.exp %14 : vector<8x16x3xf32>
    %cst_10 = arith.constant dense<0.000000e+00> : vector<8x3xf32>
    %16 = vector.multi_reduction <add>, %15, %cst_10 [1] : vector<8x16x3xf32> to vector<8x3xf32>
    %17 = vector.shape_cast %16 : vector<8x3xf32> to vector<8x1x3xf32>
    %18 = vector.broadcast %17 : vector<8x1x3xf32> to vector<8x16x3xf32>
    %19 = arith.divf %15, %18 : vector<8x16x3xf32>
    %cst_11 = arith.constant 1.000000e-10 : f32
    %20 = vector.broadcast %cst_11 : f32 to vector<8x16x3xf32>
    %21 = arith.addf %19, %20 : vector<8x16x3xf32>
    %22 = math.log %21 : vector<8x16x3xf32>
    %c0_12 = arith.constant 0 : index
    %c0_13 = arith.constant 0 : index
    %c0_14 = arith.constant 0 : index
    %23 = vector.load %arg3[%c0_12, %c0_13, %c0_14] : memref<8x16x3xf32, #tpu.memory_space<vmem>>, vector<8x16x3xf32>
    %24 = arith.addf %22, %23 : vector<8x16x3xf32>
    %cst_15 = arith.constant 0.00999999977 : f32
    %25 = vector.broadcast %cst_15 : f32 to vector<8x16x3xf32>
    %26 = arith.divf %24, %25 : vector<8x16x3xf32>
    %cst_16 = arith.constant dense<0xFF800000> : vector<8x16xf32>
    %27 = vector.multi_reduction <maximumf>, %26, %cst_16 [2] : vector<8x16x3xf32> to vector<8x16xf32>
    %28 = vector.shape_cast %27 : vector<8x16xf32> to vector<8x16x1xf32>
    %29 = vector.broadcast %28 : vector<8x16x1xf32> to vector<8x16x3xf32>
    %30 = arith.subf %26, %29 : vector<8x16x3xf32>
    %31 = math.exp %30 : vector<8x16x3xf32>
    %cst_17 = arith.constant dense<0.000000e+00> : vector<8x16xf32>
    %32 = vector.multi_reduction <add>, %31, %cst_17 [2] : vector<8x16x3xf32> to vector<8x16xf32>
    %33 = vector.shape_cast %32 : vector<8x16xf32> to vector<8x16x1xf32>
    %34 = vector.broadcast %33 : vector<8x16x1xf32> to vector<8x16x3xf32>
    %35 = arith.divf %31, %34 : vector<8x16x3xf32>
    %36 = vector.shape_cast %35 : vector<8x16x3xf32> to vector<128x3xf32>
    %c0_18 = arith.constant 0 : index
    %c0_19 = arith.constant 0 : index
    %37 = vector.load %arg6[%c0_18, %c0_19] : memref<32x144xbf16, #tpu.memory_space<vmem>>, vector<32x144xbf16>
    %cst_20 = arith.constant dense<0.000000e+00> : vector<128x144xf32>
    %38 = tpu.matmul %3, %37, %cst_20 {dimension_numbers = #tpu.dot_dimension_numbers<[1], [0], [0], [1], [0, 0, 1, 1], [], []>} : vector<128x32xbf16>, vector<32x144xbf16>, vector<128x144xf32> -> vector<128x144xf32>
    %c0_21 = arith.constant 0 : index
    %c0_22 = arith.constant 0 : index
    %39 = vector.load %arg7[%c0_21, %c0_22] : memref<1x144xf32, #tpu.memory_space<vmem>>, vector<1x144xf32>
    %40 = vector.broadcast %39 : vector<1x144xf32> to vector<128x144xf32>
    %41 = arith.addf %38, %40 : vector<128x144xf32>
    %cst_23 = arith.constant 0.000000e+00 : f32
    %42 = vector.broadcast %cst_23 : f32 to vector<128x144xf32>
    %43 = arith.maximumf %41, %42 : vector<128x144xf32>
    %44 = vector.extract_strided_slice %43 {offsets = [0, 0], sizes = [128, 48], strides = [1, 1]} : vector<128x144xf32> to vector<128x48xf32>
    %45 = vector.extract_strided_slice %36 {offsets = [0, 0], sizes = [128, 1], strides = [1, 1]} : vector<128x3xf32> to vector<128x1xf32>
    %46 = vector.broadcast %45 : vector<128x1xf32> to vector<128x48xf32>
    %47 = arith.mulf %44, %46 : vector<128x48xf32>
    %48 = vector.extract_strided_slice %43 {offsets = [0, 48], sizes = [128, 48], strides = [1, 1]} : vector<128x144xf32> to vector<128x48xf32>
    %49 = vector.extract_strided_slice %36 {offsets = [0, 1], sizes = [128, 1], strides = [1, 1]} : vector<128x3xf32> to vector<128x1xf32>
    %50 = vector.broadcast %49 : vector<128x1xf32> to vector<128x48xf32>
    %51 = arith.mulf %48, %50 : vector<128x48xf32>
    %52 = vector.extract_strided_slice %43 {offsets = [0, 96], sizes = [128, 48], strides = [1, 1]} : vector<128x144xf32> to vector<128x48xf32>
    %53 = vector.extract_strided_slice %36 {offsets = [0, 2], sizes = [128, 1], strides = [1, 1]} : vector<128x3xf32> to vector<128x1xf32>
    %54 = vector.broadcast %53 : vector<128x1xf32> to vector<128x48xf32>
    %55 = arith.mulf %52, %54 : vector<128x48xf32>
    %56 = tpu.concatenate %47, %51, %55 in 1 : vector<128x48xf32>, vector<128x48xf32>, vector<128x48xf32> -> vector<128x144xf32>
    %57 = arith.truncf %56 : vector<128x144xf32> to vector<128x144xbf16>
    %c0_24 = arith.constant 0 : index
    %c0_25 = arith.constant 0 : index
    %58 = vector.load %arg8[%c0_24, %c0_25] : memref<144x64xbf16, #tpu.memory_space<vmem>>, vector<144x64xbf16>
    %cst_26 = arith.constant dense<0.000000e+00> : vector<128x64xf32>
    %59 = tpu.matmul %57, %58, %cst_26 {dimension_numbers = #tpu.dot_dimension_numbers<[1], [0], [0], [1], [0, 0, 1, 1], [], []>} : vector<128x144xbf16>, vector<144x64xbf16>, vector<128x64xf32> -> vector<128x64xf32>
    %c0_27 = arith.constant 0 : index
    %c0_28 = arith.constant 0 : index
    %60 = vector.load %arg9[%c0_27, %c0_28] : memref<3x64xf32, #tpu.memory_space<vmem>>, vector<3x64xf32>
    %cst_29 = arith.constant dense<0.000000e+00> : vector<128x64xf32>
    %61 = tpu.matmul %36, %60, %cst_29 {dimension_numbers = #tpu.dot_dimension_numbers<[1], [0], [0], [1], [0, 0, 1, 1], [], []>} : vector<128x3xf32>, vector<3x64xf32>, vector<128x64xf32> -> vector<128x64xf32>
    %62 = arith.addf %59, %61 : vector<128x64xf32>
    %63 = arith.subf %1, %62 : vector<128x64xf32>
    %64 = arith.mulf %63, %63 : vector<128x64xf32>
    %65 = vector.shape_cast %64 : vector<128x64xf32> to vector<1x128x64xf32>
    %cst_30 = arith.constant dense<0.000000e+00> : vector<1xf32>
    %66 = vector.multi_reduction <add>, %65, %cst_30 [1, 2] : vector<1x128x64xf32> to vector<1xf32>
    %67 = vector.shape_cast %66 : vector<1xf32> to vector<1x1x1xf32>
    %68 = vector.extract %67[0, 0, 0] : f32 from vector<1x1x1xf32>
    %cst_31 = arith.constant 0.000000e+00 : f32
    %69 = vector.broadcast %cst_31 : f32 to vector<1x8x128xf32>
    %70 = vector.broadcast %68 : f32 to vector<1x8x128xf32>
    %71 = arith.addf %69, %70 : vector<1x8x128xf32>
    %c0_32 = arith.constant 0 : index
    %c0_33 = arith.constant 0 : index
    %c0_34 = arith.constant 0 : index
    %72 = vector.load %arg10[%c0_32, %c0_33, %c0_34] : memref<1x8x128xf32, #tpu.memory_space<vmem>>, vector<1x8x128xf32>
    tpu.vector_store %arg10[%c0_32, %c0_33, %c0_34], %71 {strides = array<i32>} : memref<1x8x128xf32, #tpu.memory_space<vmem>>, vector<1x8x128xf32>,
    return
  }
  func.func @transform_0(%arg0: i32) -> (i32, i32, i32) {
    %c0_i32 = arith.constant 0 : i32
    %c0_i32_0 = arith.constant 0 : i32
    %c0_i32_1 = arith.constant 0 : i32
    return %arg0, %c0_i32, %c0_i32_0 : i32, i32, i32
  }
  func.func @transform_1(%arg0: i32) -> (i32, i32, i32) {
    %c0_i32 = arith.constant 0 : i32
    %c0_i32_0 = arith.constant 0 : i32
    %c0_i32_1 = arith.constant 0 : i32
    return %arg0, %c0_i32, %c0_i32_0 : i32, i32, i32
  }
  func.func @transform_2(%arg0: i32) -> (i32, i32, i32) {
    %c0_i32 = arith.constant 0 : i32
    %c0_i32_0 = arith.constant 0 : i32
    %c0_i32_1 = arith.constant 0 : i32
    return %arg0, %c0_i32, %c0_i32_0 : i32, i32, i32
  }
  func.func @transform_3(%arg0: i32) -> (i32, i32) {
    %c0_i32 = arith.constant 0 : i32
    %c0_i32_0 = arith.constant 0 : i32
    %c0_i32_1 = arith.constant 0 : i32
    return %c0_i32, %c0_i32_0 : i32, i32
  }
  func.func @transform_4(%arg0: i32) -> (i32, i32) {
    %c0_i32 = arith.constant 0 : i32
    %c0_i32_0 = arith.constant 0 : i32
    %c0_i32_1 = arith.constant 0 : i32
    return %c0_i32, %c0_i32_0 : i32, i32
  }
  func.func @transform_5(%arg0: i32) -> (i32, i32) {
    %c0_i32 = arith.constant 0 : i32
    %c0_i32_0 = arith.constant 0 : i32
    %c0_i32_1 = arith.constant 0 : i32
    return %c0_i32, %c0_i32_0 : i32, i32
  }
  func.func @transform_6(%arg0: i32) -> (i32, i32) {
    %c0_i32 = arith.constant 0 : i32
    %c0_i32_0 = arith.constant 0 : i32
    %c0_i32_1 = arith.constant 0 : i32
    return %c0_i32, %c0_i32_0 : i32, i32
  }
  func.func @transform_7(%arg0: i32) -> (i32, i32) {
    %c0_i32 = arith.constant 0 : i32
    %c0_i32_0 = arith.constant 0 : i32
    %c0_i32_1 = arith.constant 0 : i32
    return %c0_i32, %c0_i32_0 : i32, i32
  }
  func.func @transform_8(%arg0: i32) -> (i32, i32) {
    %c0_i32 = arith.constant 0 : i32
    %c0_i32_0 = arith.constant 0 : i32
    %c0_i32_1 = arith.constant 0 : i32
    return %c0_i32, %c0_i32_0 : i32, i32
  }
  func.func @transform_9(%arg0: i32) -> (i32, i32, i32) {
    %c0_i32 = arith.constant 0 : i32
    %c0_i32_0 = arith.constant 0 : i32
    %c0_i32_1 = arith.constant 0 : i32
    return %arg0, %c0_i32, %c0_i32_0 : i32, i32, i32
  }
}

</mosaic_0001>

<llo_original>
// kernel: tpu_custom_call.1
$region0: #{tpu_custom_call.1}
  #allocation0 [shape = 'u32[]', space=smem, size = 0x4, offset = 0x4, fixed_abs, tag = 'smem constant byte address 0x4 - core index']
  #allocation1 [shape = 'u32[144,128]{1,0:T(1,128)}', space=vmem, size = 0x12000, scoped, tag = 'internal scratch']
  %s0 = inlined_call_operand.vmem [shape: f32[8,16,64], index: 0, kind: input, shape index: {}]
  %s1 = inlined_call_operand.vmem [shape: bf16[8,16,32], index: 1, kind: input, shape index: {}]
  %s2 = inlined_call_operand.vmem [shape: f32[8,16,3], index: 2, kind: input, shape index: {}]
  %s3 = inlined_call_operand.vmem [shape: bf16[64,3], index: 3, kind: input, shape index: {}]
  %s4 = inlined_call_operand.vmem [shape: f32[1,3], index: 4, kind: input, shape index: {}]
  %s5 = inlined_call_operand.vmem [shape: bf16[32,144], index: 5, kind: input, shape index: {}]
  %s6 = inlined_call_operand.vmem [shape: f32[1,144], index: 6, kind: input, shape index: {}]
  %s7 = inlined_call_operand.vmem [shape: bf16[144,64], index: 7, kind: input, shape index: {}]
  %s8 = inlined_call_operand.vmem [shape: f32[3,64], index: 8, kind: input, shape index: {}]
  %s9 = inlined_call_operand.hbm [shape: f32[1,8,128], index: 9, kind: output, shape index: {}]
  %s10 = sld [smem:[#allocation0]]
  $region46: #{tpu_custom_call.1} parent=0
    _
  %s12 = ssub.s32 1, %s10
  %s13 = scalar_select 0, %s12, %s10
  $region1: #{tpu_custom_call.1} parent=0
    #allocation2 [shape = 'u8[4096]{0}', space=vmem, size = 0x1000, scoped, tag = 'output window, operand 0, single buffered']
    #allocation3 [shape = 's32[1]{0}', space=sflag, size = 0x4, scoped, tag = 'scoped memory for tpu_custom_call.1']
    %14 = vsyncpa [#allocation3], 0
    // Predicated region
    $region2: #{tpu_custom_call.1} parent=1 // pred_check
      _
    $region3: #{tpu_custom_call.1} parent=1 // pred_check_branch
      %16 = sbr.rel (0) target = $region5
    $region4: #{tpu_custom_call.1} parent=1 // pred_region
      _
    $region5: #{tpu_custom_call.1} parent=1 // pred_fallthru
      _
    // Predicated region
    $region6: #{tpu_custom_call.1} parent=1 // pred_check
      _
    $region7: #{tpu_custom_call.1} parent=1 // pred_check_branch
      %18 = sbr.rel (0) target = $region9
    $region8: #{tpu_custom_call.1} parent=1 // pred_region
      _
    $region9: #{tpu_custom_call.1} parent=1 // pred_fallthru
      _
    // Predicated region
    $region10: #{tpu_custom_call.1} parent=1 // pred_check
      _
    $region11: #{tpu_custom_call.1} parent=1 // pred_check_branch
      %20 = sbr.rel (0) target = $region13
    $region12: #{tpu_custom_call.1} parent=1 // pred_region
      _
    $region13: #{tpu_custom_call.1} parent=1 // pred_fallthru
      _
    // Predicated region
    $region14: #{tpu_custom_call.1} parent=1 // pred_check
      _
    $region15: #{tpu_custom_call.1} parent=1 // pred_check_branch
      %22 = sbr.rel (0) target = $region17
    $region16: #{tpu_custom_call.1} parent=1 // pred_region
      _
    $region17: #{tpu_custom_call.1} parent=1 // pred_fallthru
      _
    // Predicated region
    $region18: #{tpu_custom_call.1} parent=1 // pred_check
      _
    $region19: #{tpu_custom_call.1} parent=1 // pred_check_branch
      %24 = sbr.rel (0) target = $region21
    $region20: #{tpu_custom_call.1} parent=1 // pred_region
      _
    $region21: #{tpu_custom_call.1} parent=1 // pred_fallthru
      _
    // Predicated region
    $region22: #{tpu_custom_call.1} parent=1 // pred_check
      _
    $region23: #{tpu_custom_call.1} parent=1 // pred_check_branch
      %26 = sbr.rel (0) target = $region25
    $region24: #{tpu_custom_call.1} parent=1 // pred_region
      _
    $region25: #{tpu_custom_call.1} parent=1 // pred_fallthru
      _
    // Predicated region
    $region26: #{tpu_custom_call.1} parent=1 // pred_check
      _
    $region27: #{tpu_custom_call.1} parent=1 // pred_check_branch
      %28 = sbr.rel (0) target = $region29
    $region28: #{tpu_custom_call.1} parent=1 // pred_region
      _
    $region29: #{tpu_custom_call.1} parent=1 // pred_fallthru
      _
    // Predicated region
    $region30: #{tpu_custom_call.1} parent=1 // pred_check
      _
    $region31: #{tpu_custom_call.1} parent=1 // pred_check_branch
      %30 = sbr.rel (0) target = $region33
    $region32: #{tpu_custom_call.1} parent=1 // pred_region
      _
    $region33: #{tpu_custom_call.1} parent=1 // pred_fallthru
      _
    // Predicated region
    $region34: #{tpu_custom_call.1} parent=1 // pred_check
      _
    $region35: #{tpu_custom_call.1} parent=1 // pred_check_branch
      %32 = sbr.rel (0) target = $region37
    $region36: #{tpu_custom_call.1} parent=1 // pred_region
      _
    $region37: #{tpu_custom_call.1} parent=1 // pred_fallthru
      _
    %v34 = vld [vmem:[%s0] sm:$0xff]
    %v35 = vld [vmem:[%s0 + $0x8] sm:$0xff]
    %v36 = vld [vmem:[%s0 + $0x10] sm:$0xff]
    %v37 = vld [vmem:[%s0 + $0x18] sm:$0xff]
    %v38 = vld [vmem:[%s0 + $0x20] sm:$0xff]
    %v39 = vld [vmem:[%s0 + $0x28] sm:$0xff]
    %v40 = vld [vmem:[%s0 + $0x30] sm:$0xff]
    %v41 = vld [vmem:[%s0 + $0x38] sm:$0xff]
    %v42 = vld [vmem:[%s0 + $0x40] sm:$0xff]
    %v43 = vld [vmem:[%s0 + $0x48] sm:$0xff]
    %v44 = vld [vmem:[%s0 + $0x50] sm:$0xff]
    %v45 = vld [vmem:[%s0 + $0x58] sm:$0xff]
    %v46 = vld [vmem:[%s0 + $0x60] sm:$0xff]
    %v47 = vld [vmem:[%s0 + $0x68] sm:$0xff]
    %v48 = vld [vmem:[%s0 + $0x70] sm:$0xff]
    %v49 = vld [vmem:[%s0 + $0x78] sm:$0xff]
    %v50 = vld [vmem:[%s1] sm:$0xf]
    %v51 = vld [vmem:[%s1 + $0x4] sm:$0xf]
    %v52 = vld [vmem:[%s1 + $0x8] sm:$0xf]
    %v53 = vld [vmem:[%s1 + $0xc] sm:$0xf]
    %v54 = vld [vmem:[%s1 + $0x10] sm:$0xf]
    %v55 = vld [vmem:[%s1 + $0x14] sm:$0xf]
    %v56 = vld [vmem:[%s1 + $0x18] sm:$0xf]
    %v57 = vld [vmem:[%s1 + $0x1c] sm:$0xf]
    %v58 = vld [vmem:[%s1 + $0x20] sm:$0xf]
    %v59 = vld [vmem:[%s1 + $0x24] sm:$0xf]
    %v60 = vld [vmem:[%s1 + $0x28] sm:$0xf]
    %v61 = vld [vmem:[%s1 + $0x2c] sm:$0xf]
    %v62 = vld [vmem:[%s1 + $0x30] sm:$0xf]
    %v63 = vld [vmem:[%s1 + $0x34] sm:$0xf]
    %v64 = vld [vmem:[%s1 + $0x38] sm:$0xf]
    %v65 = vld [vmem:[%s1 + $0x3c] sm:$0xf]
    %v66 = vpack.c.bf16 %v35, %v34
    %v67 = vpack.c.bf16 %v37, %v36
    %v68 = vpack.c.bf16 %v39, %v38
    %v69 = vpack.c.bf16 %v41, %v40
    %v70 = vpack.c.bf16 %v43, %v42
    %v71 = vpack.c.bf16 %v45, %v44
    %v72 = vpack.c.bf16 %v47, %v46
    %v73 = vpack.c.bf16 %v49, %v48
    %v74 = vld [vmem:[%s3] sm:$0xf]
    %v75 = vld [vmem:[%s3 + $0x4] sm:$0xf]
    %v76 = vld [vmem:[%s3 + $0x8] sm:$0xf]
    %v77 = vld [vmem:[%s3 + $0xc] sm:$0xf]
    %v78 = vld [vmem:[%s3 + $0x10] sm:$0xf]
    %v79 = vld [vmem:[%s3 + $0x14] sm:$0xf]
    %v80 = vld [vmem:[%s3 + $0x18] sm:$0xf]
    %v81 = vld [vmem:[%s3 + $0x1c] sm:$0xf]
    %v82 = vld [vmem:[%s4] sm:$0x1]
    %v84 = vlaneseq
    %v85 = vshrl.u32 %v84, 7
    %v86 = vsub.s32 0, %v85
    %v87 = vrot.slane %v82, %v86
    %v97 = vunpack.c.l.b16 %v74
    %v98 = vunpack.c.l.b16 %v75
    %v99 = vunpack.c.l.b16 %v76
    %v100 = vunpack.c.l.b16 %v77
    %v101 = vunpack.c.l.b16 %v78
    %v102 = vunpack.c.l.b16 %v79
    %v103 = vunpack.c.l.b16 %v80
    %v104 = vunpack.c.l.b16 %v81
    %v105 = vpack.c.b16 %v98, %v97
    %v106 = vpack.c.b16 %v100, %v99
    %v107 = vpack.c.b16 %v102, %v101
    %v108 = vpack.c.b16 %v104, %v103
    %vm113 = vcmask 523264
    %v115 = vsel %vm113, %v66, 0
    %v118 = vsel %vm113, %v67, 0
    %v121 = vsel %vm113, %v68, 0
    %v124 = vsel %vm113, %v69, 0
    %v127 = vsel %vm113, %v70, 0
    %v130 = vsel %vm113, %v71, 0
    %v133 = vsel %vm113, %v72, 0
    %v136 = vsel %vm113, %v73, 0
    %138 = vmatprep.subr.bf16.mxu0 0
    %139 = vmatpush1.bf16.msra.mxu0 %v105
    %140 = vmatprep.subr.bf16.mxu0 0
    %141 = vmatpush1.bf16.msra.mxu0 %v106
    %142 = vmatprep.subr.bf16.mxu0 0
    %143 = vmatpush1.bf16.msra.mxu0 %v107
    %144 = vmatprep.subr.bf16.mxu0 0
    %145 = vmatpush1.bf16.msra.mxu0 %v108
    %146 = vmatprep.subr.bf16.mxu0 0
    %147 = vmatpush1.bf16.msra.mxu0 0
    %148 = vmatprep.subr.bf16.mxu0 0
    %149 = vmatpush1.bf16.msra.mxu0 0
    %150 = vmatprep.subr.bf16.mxu0 0
    %151 = vmatpush1.bf16.msra.mxu0 0
    %152 = vmatprep.subr.bf16.mxu0 0
    %153 = vmatpush1.bf16.msra.mxu0 0
    %154 = vmatprep.subr.bf16.mxu0 0
    %155 = vmatpush1.bf16.msra.mxu0 0
    %156 = vmatprep.subr.bf16.mxu0 0
    %157 = vmatpush1.bf16.msra.mxu0 0
    %158 = vmatprep.subr.bf16.mxu0 0
    %159 = vmatpush1.bf16.msra.mxu0 0
    %160 = vmatprep.subr.bf16.mxu0 0
    %161 = vmatpush1.bf16.msra.mxu0 0
    %162 = vmatprep.subr.bf16.mxu0 0
    %163 = vmatpush1.bf16.msra.mxu0 0
    %164 = vmatprep.subr.bf16.mxu0 0
    %165 = vmatpush1.bf16.msra.mxu0 0
    %166 = vmatprep.subr.bf16.mxu0 0
    %167 = vmatpush1.bf16.msra.mxu0 0
    %168 = vmatprep.subr.bf16.mxu0 0
    %169 = vmatpush1.bf16.msra.mxu0 0
    %170 = vmatprep.mubr.bf16.mxu0 0
    %171 = vmatmul.mubr.bf16.gmra.mrb[0].mxu0 %v115
    %v172 = vpop.f32.mrb[0].mxu0
    %v173 = vadd.f32 %v87, %v172
    %v174 = vpop.f32.mrb[0].mxu0
    %v175 = vpop.f32.mrb[0].mxu0
    %v176 = vadd.f32 %v87, %v175
    %v177 = vpop.f32.mrb[0].mxu0
    %178 = vmatprep.mubr.bf16.mxu0 0
    %179 = vmatmul.mubr.bf16.gmra.mrb[0].mxu0 %v118
    %v180 = vpop.f32.mrb[0].mxu0
    %v181 = vadd.f32 %v87, %v180
    %v182 = vpop.f32.mrb[0].mxu0
    %v183 = vpop.f32.mrb[0].mxu0
    %v184 = vadd.f32 %v87, %v183
    %v185 = vpop.f32.mrb[0].mxu0
    %186 = vmatprep.mubr.bf16.mxu0 0
    %187 = vmatmul.mubr.bf16.gmra.mrb[0].mxu0 %v121
    %v188 = vpop.f32.mrb[0].mxu0
    %v189 = vadd.f32 %v87, %v188
    %v190 = vpop.f32.mrb[0].mxu0
    %v191 = vpop.f32.mrb[0].mxu0
    %v192 = vadd.f32 %v87, %v191
    %v193 = vpop.f32.mrb[0].mxu0
    %194 = vmatprep.mubr.bf16.mxu0 0
    %195 = vmatmul.mubr.bf16.gmra.mrb[0].mxu0 %v124
    %v196 = vpop.f32.mrb[0].mxu0
    %v197 = vadd.f32 %v87, %v196
    %v198 = vpop.f32.mrb[0].mxu0
    %v199 = vpop.f32.mrb[0].mxu0
    %v200 = vadd.f32 %v87, %v199
    %v201 = vpop.f32.mrb[0].mxu0
    %202 = vmatprep.mubr.bf16.mxu0 0
    %203 = vmatmul.mubr.bf16.gmra.mrb[0].mxu0 %v127
    %v204 = vpop.f32.mrb[0].mxu0
    %v205 = vadd.f32 %v87, %v204
    %v206 = vpop.f32.mrb[0].mxu0
    %v207 = vpop.f32.mrb[0].mxu0
    %v208 = vadd.f32 %v87, %v207
    %v209 = vpop.f32.mrb[0].mxu0
    %210 = vmatprep.mubr.bf16.mxu0 0
    %211 = vmatmul.mubr.bf16.gmra.mrb[0].mxu0 %v130
    %v212 = vpop.f32.mrb[0].mxu0
    %v213 = vadd.f32 %v87, %v212
    %v214 = vpop.f32.mrb[0].mxu0
    %v215 = vpop.f32.mrb[0].mxu0
    %v216 = vadd.f32 %v87, %v215
    %v217 = vpop.f32.mrb[0].mxu0
    %218 = vmatprep.mubr.bf16.mxu0 0
    %219 = vmatmul.mubr.bf16.gmra.mrb[0].mxu0 %v133
    %v220 = vpop.f32.mrb[0].mxu0
    %v221 = vadd.f32 %v87, %v220
    %v222 = vpop.f32.mrb[0].mxu0
    %v223 = vpop.f32.mrb[0].mxu0
    %v224 = vadd.f32 %v87, %v223
    %v225 = vpop.f32.mrb[0].mxu0
    %226 = vmatprep.mubr.bf16.mxu0 0
    %227 = vmatmul.mubr.bf16.gmra.mrb[0].mxu0 %v136
    %v228 = vpop.f32.mrb[0].mxu0
    %v229 = vadd.f32 %v87, %v228
    %v230 = vpop.f32.mrb[0].mxu0
    %v231 = vpop.f32.mrb[0].mxu0
    %v232 = vadd.f32 %v87, %v231
    %v233 = vpop.f32.mrb[0].mxu0
    %234 = vdwg.mxu0
    %vm235 = vcmask 23552
    %v236 = vsel %vm235, %v173, -inf
    %v237 = vsel %vm235, %v176, -inf
    %v238 = vmax.f32 %v236, %v237
    %v239 = vrot.slane %v238, 4
    %v240 = vmax.f32 %v238, %v239
    %v241 = vrot.slane %v240, 2
    %v242 = vmax.f32 %v240, %v241
    %v243 = vrot.slane %v242, 1
    %v244 = vmax.f32 %v242, %v243
    %v245 = vsel %vm235, %v181, -inf
    %v246 = vsel %vm235, %v184, -inf
    %v247 = vmax.f32 %v245, %v246
    %v248 = vrot.slane %v247, 4
    %v249 = vmax.f32 %v247, %v248
    %v250 = vrot.slane %v249, 2
    %v251 = vmax.f32 %v249, %v250
    %v252 = vrot.slane %v251, 1
    %v253 = vmax.f32 %v251, %v252
    %v254 = vsel %vm235, %v189, -inf
    %v255 = vsel %vm235, %v192, -inf
    %v256 = vmax.f32 %v254, %v255
    %v257 = vrot.slane %v256, 4
    %v258 = vmax.f32 %v256, %v257
    %v259 = vrot.slane %v258, 2
    %v260 = vmax.f32 %v258, %v259
    %v261 = vrot.slane %v260, 1
    %v262 = vmax.f32 %v260, %v261
    %v263 = vsel %vm235, %v197, -inf
    %v264 = vsel %vm235, %v200, -inf
    %v265 = vmax.f32 %v263, %v264
    %v266 = vrot.slane %v265, 4
    %v267 = vmax.f32 %v265, %v266
    %v268 = vrot.slane %v267, 2
    %v269 = vmax.f32 %v267, %v268
    %v270 = vrot.slane %v269, 1
    %v271 = vmax.f32 %v269, %v270
    %v272 = vsel %vm235, %v205, -inf
    %v273 = vsel %vm235, %v208, -inf
    %v274 = vmax.f32 %v272, %v273
    %v275 = vrot.slane %v274, 4
    %v276 = vmax.f32 %v274, %v275
    %v277 = vrot.slane %v276, 2
    %v278 = vmax.f32 %v276, %v277
    %v279 = vrot.slane %v278, 1
    %v280 = vmax.f32 %v278, %v279
    %v281 = vsel %vm235, %v213, -inf
    %v282 = vsel %vm235, %v216, -inf
    %v283 = vmax.f32 %v281, %v282
    %v284 = vrot.slane %v283, 4
    %v285 = vmax.f32 %v283, %v284
    %v286 = vrot.slane %v285, 2
    %v287 = vmax.f32 %v285, %v286
    %v288 = vrot.slane %v287, 1
    %v289 = vmax.f32 %v287, %v288
    %v290 = vsel %vm235, %v221, -inf
    %v291 = vsel %vm235, %v224, -inf
    %v292 = vmax.f32 %v290, %v291
    %v293 = vrot.slane %v292, 4
    %v294 = vmax.f32 %v292, %v293
    %v295 = vrot.slane %v294, 2
    %v296 = vmax.f32 %v294, %v295
    %v297 = vrot.slane %v296, 1
    %v298 = vmax.f32 %v296, %v297
    %v299 = vsel %vm235, %v229, -inf
    %v300 = vsel %vm235, %v232, -inf
    %v301 = vmax.f32 %v299, %v300
    %v302 = vrot.slane %v301, 4
    %v303 = vmax.f32 %v301, %v302
    %v304 = vrot.slane %v303, 2
    %v305 = vmax.f32 %v303, %v304
    %v306 = vrot.slane %v305, 1
    %v307 = vmax.f32 %v305, %v306
    %v308 = vsub.f32 %v173, %v244
    %v309 = vsub.f32 %v176, %v244
    %v310 = vsub.f32 %v181, %v253
    %v311 = vsub.f32 %v184, %v253
    %v312 = vsub.f32 %v189, %v262
    %v313 = vsub.f32 %v192, %v262
    %v314 = vsub.f32 %v197, %v271
    %v315 = vsub.f32 %v200, %v271
    %v316 = vsub.f32 %v205, %v280
    %v317 = vsub.f32 %v208, %v280
    %v318 = vsub.f32 %v213, %v289
    %v319 = vsub.f32 %v216, %v289
    %v320 = vsub.f32 %v221, %v298
    %v321 = vsub.f32 %v224, %v298
    %v322 = vsub.f32 %v229, %v307
    %v323 = vsub.f32 %v232, %v307
    %v324 = vmul.f32 %v308, 1.442695
    %v325 = vpow.pop %v324
    %v326 = vmul.f32 %v309, 1.442695
    %v327 = vpow.pop %v326
    %v328 = vmul.f32 %v310, 1.442695
    %v329 = vpow.pop %v328
    %v330 = vmul.f32 %v311, 1.442695
    %v331 = vpow.pop %v330
    %v332 = vmul.f32 %v312, 1.442695
    %v333 = vpow.pop %v332
    %v334 = vmul.f32 %v313, 1.442695
    %v335 = vpow.pop %v334
    %v336 = vmul.f32 %v314, 1.442695
    %v337 = vpow.pop %v336
    %v338 = vmul.f32 %v315, 1.442695
    %v339 = vpow.pop %v338
    %v340 = vmul.f32 %v316, 1.442695
    %v341 = vpow.pop %v340
    %v342 = vmul.f32 %v317, 1.442695
    %v343 = vpow.pop %v342
    %v344 = vmul.f32 %v318, 1.442695
    %v345 = vpow.pop %v344
    %v346 = vmul.f32 %v319, 1.442695
    %v347 = vpow.pop %v346
    %v348 = vmul.f32 %v320, 1.442695
    %v349 = vpow.pop %v348
    %v350 = vmul.f32 %v321, 1.442695
    %v351 = vpow.pop %v350
    %v352 = vmul.f32 %v322, 1.442695
    %v353 = vpow.pop %v352
    %v354 = vmul.f32 %v323, 1.442695
    %v355 = vpow.pop %v354
    %v356 = vsel %vm235, %v325, 0.0
    %v357 = vsel %vm235, %v327, 0.0
    %v358 = vadd.f32 %v356, %v357
    %v359 = vrot.slane %v358, 4
    %v360 = vadd.f32 %v358, %v359
    %v361 = vrot.slane %v360, 2
    %v362 = vadd.f32 %v360, %v361
    %v363 = vrot.slane %v362, 1
    %v364 = vadd.f32 %v362, %v363
    %v365 = vsel %vm235, %v329, 0.0
    %v366 = vsel %vm235, %v331, 0.0
    %v367 = vadd.f32 %v365, %v366
    %v368 = vrot.slane %v367, 4
    %v369 = vadd.f32 %v367, %v368
    %v370 = vrot.slane %v369, 2
    %v371 = vadd.f32 %v369, %v370
    %v372 = vrot.slane %v371, 1
    %v373 = vadd.f32 %v371, %v372
    %v374 = vsel %vm235, %v333, 0.0
    %v375 = vsel %vm235, %v335, 0.0
    %v376 = vadd.f32 %v374, %v375
    %v377 = vrot.slane %v376, 4
    %v378 = vadd.f32 %v376, %v377
    %v379 = vrot.slane %v378, 2
    %v380 = vadd.f32 %v378, %v379
    %v381 = vrot.slane %v380, 1
    %v382 = vadd.f32 %v380, %v381
    %v383 = vsel %vm235, %v337, 0.0
    %v384 = vsel %vm235, %v339, 0.0
    %v385 = vadd.f32 %v383, %v384
    %v386 = vrot.slane %v385, 4
    %v387 = vadd.f32 %v385, %v386
    %v388 = vrot.slane %v387, 2
    %v389 = vadd.f32 %v387, %v388
    %v390 = vrot.slane %v389, 1
    %v391 = vadd.f32 %v389, %v390
    %v392 = vsel %vm235, %v341, 0.0
    %v393 = vsel %vm235, %v343, 0.0
    %v394 = vadd.f32 %v392, %v393
    %v395 = vrot.slane %v394, 4
    %v396 = vadd.f32 %v394, %v395
    %v397 = vrot.slane %v396, 2
    %v398 = vadd.f32 %v396, %v397
    %v399 = vrot.slane %v398, 1
    %v400 = vadd.f32 %v398, %v399
    %v401 = vsel %vm235, %v345, 0.0
    %v402 = vsel %vm235, %v347, 0.0
    %v403 = vadd.f32 %v401, %v402
    %v404 = vrot.slane %v403, 4
    %v405 = vadd.f32 %v403, %v404
    %v406 = vrot.slane %v405, 2
    %v407 = vadd.f32 %v405, %v406
    %v408 = vrot.slane %v407, 1
    %v409 = vadd.f32 %v407, %v408
    %v410 = vsel %vm235, %v349, 0.0
    %v411 = vsel %vm235, %v351, 0.0
    %v412 = vadd.f32 %v410, %v411
    %v413 = vrot.slane %v412, 4
    %v414 = vadd.f32 %v412, %v413
    %v415 = vrot.slane %v414, 2
    %v416 = vadd.f32 %v414, %v415
    %v417 = vrot.slane %v416, 1
    %v418 = vadd.f32 %v416, %v417
    %v419 = vsel %vm235, %v353, 0.0
    %v420 = vsel %vm235, %v355, 0.0
    %v421 = vadd.f32 %v419, %v420
    %v422 = vrot.slane %v421, 4
    %v423 = vadd.f32 %v421, %v422
    %v424 = vrot.slane %v423, 2
    %v425 = vadd.f32 %v423, %v424
    %v426 = vrot.slane %v425, 1
    %v427 = vadd.f32 %v425, %v426
    %v428 = vrcp.pop %v364
    %v429 = vmul.f32 %v325, %v428
    %v430 = vmul.f32 %v327, %v428
    %v431 = vrcp.pop %v373
    %v432 = vmul.f32 %v329, %v431
    %v433 = vmul.f32 %v331, %v431
    %v434 = vrcp.pop %v382
    %v435 = vmul.f32 %v333, %v434
    %v436 = vmul.f32 %v335, %v434
    %v437 = vrcp.pop %v391
    %v438 = vmul.f32 %v337, %v437
    %v439 = vmul.f32 %v339, %v437
    %v440 = vrcp.pop %v400
    %v441 = vmul.f32 %v341, %v440
    %v442 = vmul.f32 %v343, %v440
    %v443 = vrcp.pop %v409
    %v444 = vmul.f32 %v345, %v443
    %v445 = vmul.f32 %v347, %v443
    %v446 = vrcp.pop %v418
    %v447 = vmul.f32 %v349, %v446
    %v448 = vmul.f32 %v351, %v446
    %v449 = vrcp.pop %v427
    %v450 = vmul.f32 %v353, %v449
    %v451 = vmul.f32 %v355, %v449
    %v452 = vadd.f32 %v429, 1e-10
    %v453 = vadd.f32 %v430, 1e-10
    %v454 = vadd.f32 %v432, 1e-10
    %v455 = vadd.f32 %v433, 1e-10
    %v456 = vadd.f32 %v435, 1e-10
    %v457 = vadd.f32 %v436, 1e-10
    %v458 = vadd.f32 %v438, 1e-10
    %v459 = vadd.f32 %v439, 1e-10
    %v460 = vadd.f32 %v441, 1e-10
    %v461 = vadd.f32 %v442, 1e-10
    %v462 = vadd.f32 %v444, 1e-10
    %v463 = vadd.f32 %v445, 1e-10
    %v464 = vadd.f32 %v447, 1e-10
    %v465 = vadd.f32 %v448, 1e-10
    %v466 = vadd.f32 %v450, 1e-10
    %v467 = vadd.f32 %v451, 1e-10
    %v468 = vlog2.pop %v452
    %v469 = vmul.f32 %v468, 0.6931472
    %v470 = vlog2.pop %v453
    %v471 = vmul.f32 %v470, 0.6931472
    %v472 = vlog2.pop %v454
    %v473 = vmul.f32 %v472, 0.6931472
    %v474 = vlog2.pop %v455
    %v475 = vmul.f32 %v474, 0.6931472
    %v476 = vlog2.pop %v456
    %v477 = vmul.f32 %v476, 0.6931472
    %v478 = vlog2.pop %v457
    %v479 = vmul.f32 %v478, 0.6931472
    %v480 = vlog2.pop %v458
    %v481 = vmul.f32 %v480, 0.6931472
    %v482 = vlog2.pop %v459
    %v483 = vmul.f32 %v482, 0.6931472
    %v484 = vlog2.pop %v460
    %v485 = vmul.f32 %v484, 0.6931472
    %v486 = vlog2.pop %v461
    %v487 = vmul.f32 %v486, 0.6931472
    %v488 = vlog2.pop %v462
    %v489 = vmul.f32 %v488, 0.6931472
    %v490 = vlog2.pop %v463
    %v491 = vmul.f32 %v490, 0.6931472
    %v492 = vlog2.pop %v464
    %v493 = vmul.f32 %v492, 0.6931472
    %v494 = vlog2.pop %v465
    %v495 = vmul.f32 %v494, 0.6931472
    %v496 = vlog2.pop %v466
    %v497 = vmul.f32 %v496, 0.6931472
    %v498 = vlog2.pop %v467
    %v499 = vmul.f32 %v498, 0.6931472
    %v500 = vld [vmem:[%s2] sm:$0xff]
    %v501 = vld [vmem:[%s2 + $0x8] sm:$0xff]
    %v502 = vld [vmem:[%s2 + $0x10] sm:$0xff]
    %v503 = vld [vmem:[%s2 + $0x18] sm:$0xff]
    %v504 = vld [vmem:[%s2 + $0x20] sm:$0xff]
    %v505 = vld [vmem:[%s2 + $0x28] sm:$0xff]
    %v506 = vld [vmem:[%s2 + $0x30] sm:$0xff]
    %v507 = vld [vmem:[%s2 + $0x38] sm:$0xff]
    %v508 = vld [vmem:[%s2 + $0x40] sm:$0xff]
    %v509 = vld [vmem:[%s2 + $0x48] sm:$0xff]
    %v510 = vld [vmem:[%s2 + $0x50] sm:$0xff]
    %v511 = vld [vmem:[%s2 + $0x58] sm:$0xff]
    %v512 = vld [vmem:[%s2 + $0x60] sm:$0xff]
    %v513 = vld [vmem:[%s2 + $0x68] sm:$0xff]
    %v514 = vld [vmem:[%s2 + $0x70] sm:$0xff]
    %v515 = vld [vmem:[%s2 + $0x78] sm:$0xff]
    %v516 = vadd.f32 %v469, %v500
    %v517 = vadd.f32 %v471, %v501
    %v518 = vadd.f32 %v473, %v502
    %v519 = vadd.f32 %v475, %v503
    %v520 = vadd.f32 %v477, %v504
    %v521 = vadd.f32 %v479, %v505
    %v522 = vadd.f32 %v481, %v506
    %v523 = vadd.f32 %v483, %v507
    %v524 = vadd.f32 %v485, %v508
    %v525 = vadd.f32 %v487, %v509
    %v526 = vadd.f32 %v489, %v510
    %v527 = vadd.f32 %v491, %v511
    %v528 = vadd.f32 %v493, %v512
    %v529 = vadd.f32 %v495, %v513
    %v530 = vadd.f32 %v497, %v514
    %v531 = vadd.f32 %v499, %v515
    %v532 = vrcp.pop 0.01
    %v533 = vmul.f32 %v516, %v532
    %v534 = vmul.f32 %v517, %v532
    %v535 = vmul.f32 %v518, %v532
    %v536 = vmul.f32 %v519, %v532
    %v537 = vmul.f32 %v520, %v532
    %v538 = vmul.f32 %v521, %v532
    %v539 = vmul.f32 %v522, %v532
    %v540 = vmul.f32 %v523, %v532
    %v541 = vmul.f32 %v524, %v532
    %v542 = vmul.f32 %v525, %v532
    %v543 = vmul.f32 %v526, %v532
    %v544 = vmul.f32 %v527, %v532
    %v545 = vmul.f32 %v528, %v532
    %v546 = vmul.f32 %v529, %v532
    %v547 = vmul.f32 %v530, %v532
    %v548 = vmul.f32 %v531, %v532
    %v549 = vsel %vm235, %v533, -inf
    %550 = vmax.xlane.f32.xlu0 %v549
    %v551 = vpop.xlane.xlu0 %550
    %v552 = vsel %vm235, %v534, -inf
    %553 = vmax.xlane.f32.xlu0 %v552
    %v554 = vpop.xlane.xlu0 %553
    %v555 = vsel %vm235, %v535, -inf
    %556 = vmax.xlane.f32.xlu0 %v555
    %v557 = vpop.xlane.xlu0 %556
    %v558 = vsel %vm235, %v536, -inf
    %559 = vmax.xlane.f32.xlu0 %v558
    %v560 = vpop.xlane.xlu0 %559
    %v561 = vsel %vm235, %v537, -inf
    %562 = vmax.xlane.f32.xlu0 %v561
    %v563 = vpop.xlane.xlu0 %562
    %v564 = vsel %vm235, %v538, -inf
    %565 = vmax.xlane.f32.xlu0 %v564
    %v566 = vpop.xlane.xlu0 %565
    %v567 = vsel %vm235, %v539, -inf
    %568 = vmax.xlane.f32.xlu0 %v567
    %v569 = vpop.xlane.xlu0 %568
    %v570 = vsel %vm235, %v540, -inf
    %571 = vmax.xlane.f32.xlu0 %v570
    %v572 = vpop.xlane.xlu0 %571
    %v573 = vsel %vm235, %v541, -inf
    %574 = vmax.xlane.f32.xlu0 %v573
    %v575 = vpop.xlane.xlu0 %574
    %v576 = vsel %vm235, %v542, -inf
    %577 = vmax.xlane.f32.xlu0 %v576
    %v578 = vpop.xlane.xlu0 %577
    %v579 = vsel %vm235, %v543, -inf
    %580 = vmax.xlane.f32.xlu0 %v579
    %v581 = vpop.xlane.xlu0 %580
    %v582 = vsel %vm235, %v544, -inf
    %583 = vmax.xlane.f32.xlu0 %v582
    %v584 = vpop.xlane.xlu0 %583
    %v585 = vsel %vm235, %v545, -inf
    %586 = vmax.xlane.f32.xlu0 %v585
    %v587 = vpop.xlane.xlu0 %586
    %v588 = vsel %vm235, %v546, -inf
    %589 = vmax.xlane.f32.xlu0 %v588
    %v590 = vpop.xlane.xlu0 %589
    %v591 = vsel %vm235, %v547, -inf
    %592 = vmax.xlane.f32.xlu0 %v591
    %v593 = vpop.xlane.xlu0 %592
    %v594 = vsel %vm235, %v548, -inf
    %595 = vmax.xlane.f32.xlu0 %v594
    %v596 = vpop.xlane.xlu0 %595
    %v597 = vsub.f32 %v533, %v551
    %v598 = vsub.f32 %v534, %v554
    %v599 = vsub.f32 %v535, %v557
    %v600 = vsub.f32 %v536, %v560
    %v601 = vsub.f32 %v537, %v563
    %v602 = vsub.f32 %v538, %v566
    %v603 = vsub.f32 %v539, %v569
    %v604 = vsub.f32 %v540, %v572
    %v605 = vsub.f32 %v541, %v575
    %v606 = vsub.f32 %v542, %v578
    %v607 = vsub.f32 %v543, %v581
    %v608 = vsub.f32 %v544, %v584
    %v609 = vsub.f32 %v545, %v587
    %v610 = vsub.f32 %v546, %v590
    %v611 = vsub.f32 %v547, %v593
    %v612 = vsub.f32 %v548, %v596
    %v613 = vmul.f32 %v597, 1.442695
    %v614 = vpow.pop %v613
    %v615 = vmul.f32 %v598, 1.442695
    %v616 = vpow.pop %v615
    %v617 = vmul.f32 %v599, 1.442695
    %v618 = vpow.pop %v617
    %v619 = vmul.f32 %v600, 1.442695
    %v620 = vpow.pop %v619
    %v621 = vmul.f32 %v601, 1.442695
    %v622 = vpow.pop %v621
    %v623 = vmul.f32 %v602, 1.442695
    %v624 = vpow.pop %v623
    %v625 = vmul.f32 %v603, 1.442695
    %v626 = vpow.pop %v625
    %v627 = vmul.f32 %v604, 1.442695
    %v628 = vpow.pop %v627
    %v629 = vmul.f32 %v605, 1.442695
    %v630 = vpow.pop %v629
    %v631 = vmul.f32 %v606, 1.442695
    %v632 = vpow.pop %v631
    %v633 = vmul.f32 %v607, 1.442695
    %v634 = vpow.pop %v633
    %v635 = vmul.f32 %v608, 1.442695
    %v636 = vpow.pop %v635
    %v637 = vmul.f32 %v609, 1.442695
    %v638 = vpow.pop %v637
    %v639 = vmul.f32 %v610, 1.442695
    %v640 = vpow.pop %v639
    %v641 = vmul.f32 %v611, 1.442695
    %v642 = vpow.pop %v641
    %v643 = vmul.f32 %v612, 1.442695
    %v644 = vpow.pop %v643
    %v645 = vsel %vm235, %v614, 0.0
    %646 = vadd.xlane.f32.xlu0 %v645
    %v647 = vpop.xlane.xlu0 %646
    %v648 = vsel %vm235, %v616, 0.0
    %649 = vadd.xlane.f32.xlu0 %v648
    %v650 = vpop.xlane.xlu0 %649
    %v651 = vsel %vm235, %v618, 0.0
    %652 = vadd.xlane.f32.xlu0 %v651
    %v653 = vpop.xlane.xlu0 %652
    %v654 = vsel %vm235, %v620, 0.0
    %655 = vadd.xlane.f32.xlu0 %v654
    %v656 = vpop.xlane.xlu0 %655
    %v657 = vsel %vm235, %v622, 0.0
    %658 = vadd.xlane.f32.xlu0 %v657
    %v659 = vpop.xlane.xlu0 %658
    %v660 = vsel %vm235, %v624, 0.0
    %661 = vadd.xlane.f32.xlu0 %v660
    %v662 = vpop.xlane.xlu0 %661
    %v663 = vsel %vm235, %v626, 0.0
    %664 = vadd.xlane.f32.xlu0 %v663
    %v665 = vpop.xlane.xlu0 %664
    %v666 = vsel %vm235, %v628, 0.0
    %667 = vadd.xlane.f32.xlu0 %v666
    %v668 = vpop.xlane.xlu0 %667
    %v669 = vsel %vm235, %v630, 0.0
    %670 = vadd.xlane.f32.xlu0 %v669
    %v671 = vpop.xlane.xlu0 %670
    %v672 = vsel %vm235, %v632, 0.0
    %673 = vadd.xlane.f32.xlu0 %v672
    %v674 = vpop.xlane.xlu0 %673
    %v675 = vsel %vm235, %v634, 0.0
    %676 = vadd.xlane.f32.xlu0 %v675
    %v677 = vpop.xlane.xlu0 %676
    %v678 = vsel %vm235, %v636, 0.0
    %679 = vadd.xlane.f32.xlu0 %v678
    %v680 = vpop.xlane.xlu0 %679
    %v681 = vsel %vm235, %v638, 0.0
    %682 = vadd.xlane.f32.xlu0 %v681
    %v683 = vpop.xlane.xlu0 %682
    %v684 = vsel %vm235, %v640, 0.0
    %685 = vadd.xlane.f32.xlu0 %v684
    %v686 = vpop.xlane.xlu0 %685
    %v687 = vsel %vm235, %v642, 0.0
    %688 = vadd.xlane.f32.xlu0 %v687
    %v689 = vpop.xlane.xlu0 %688
    %v690 = vsel %vm235, %v644, 0.0
    %691 = vadd.xlane.f32.xlu0 %v690
    %v692 = vpop.xlane.xlu0 %691
    %v693 = vrcp.pop %v647
    %v694 = vmul.f32 %v614, %v693
    %v695 = vrcp.pop %v650
    %v696 = vmul.f32 %v616, %v695
    %v697 = vrcp.pop %v653
    %v698 = vmul.f32 %v618, %v697
    %v699 = vrcp.pop %v656
    %v700 = vmul.f32 %v620, %v699
    %v701 = vrcp.pop %v659
    %v702 = vmul.f32 %v622, %v701
    %v703 = vrcp.pop %v662
    %v704 = vmul.f32 %v624, %v703
    %v705 = vrcp.pop %v665
    %v706 = vmul.f32 %v626, %v705
    %v707 = vrcp.pop %v668
    %v708 = vmul.f32 %v628, %v707
    %v709 = vrcp.pop %v671
    %v710 = vmul.f32 %v630, %v709
    %v711 = vrcp.pop %v674
    %v712 = vmul.f32 %v632, %v711
    %v713 = vrcp.pop %v677
    %v714 = vmul.f32 %v634, %v713
    %v715 = vrcp.pop %v680
    %v716 = vmul.f32 %v636, %v715
    %v717 = vrcp.pop %v683
    %v718 = vmul.f32 %v638, %v717
    %v719 = vrcp.pop %v686
    %v720 = vmul.f32 %v640, %v719
    %v721 = vrcp.pop %v689
    %v722 = vmul.f32 %v642, %v721
    %v723 = vrcp.pop %v692
    %v724 = vmul.f32 %v644, %v723
    %v725 = vld [vmem:[%s5] sm:$0xff]
    %v726 = vld [vmem:[%s5 + $0x8] sm:$0xff]
    %v727 = vld [vmem:[%s5 + $0x10] sm:$0xff]
    %v728 = vld [vmem:[%s5 + $0x18] sm:$0xff]
    %v729 = vld [vmem:[%s6] sm:$0x3]
    %v731 = vlaneseq
    %v732 = vshrl.u32 %v731, 7
    %v733 = vsub.s32 0, %v732
    %v734 = vrot.slane %v729, %v733
    %v735 = vlaneseq
    %v736 = vshrl.u32 %v735, 7
    %v737 = vsub.s32 1, %v736
    %v738 = vrot.slane %v729, %v737
    %v757 = vunpack.c.l.b16 %v50
    %v758 = vunpack.c.l.b16 %v51
    %v759 = vunpack.c.l.b16 %v52
    %v760 = vunpack.c.l.b16 %v53
    %v761 = vunpack.c.l.b16 %v54
    %v762 = vunpack.c.l.b16 %v55
    %v763 = vunpack.c.l.b16 %v56
    %v764 = vunpack.c.l.b16 %v57
    %v765 = vunpack.c.l.b16 %v58
    %v766 = vunpack.c.l.b16 %v59
    %v767 = vunpack.c.l.b16 %v60
    %v768 = vunpack.c.l.b16 %v61
    %v769 = vunpack.c.l.b16 %v62
    %v770 = vunpack.c.l.b16 %v63
    %v771 = vunpack.c.l.b16 %v64
    %v772 = vunpack.c.l.b16 %v65
    %v773 = vpack.c.b16 %v758, %v757
    %v774 = vpack.c.b16 %v760, %v759
    %v775 = vpack.c.b16 %v762, %v761
    %v776 = vpack.c.b16 %v764, %v763
    %v777 = vpack.c.b16 %v766, %v765
    %v778 = vpack.c.b16 %v768, %v767
    %v779 = vpack.c.b16 %v770, %v769
    %v780 = vpack.c.b16 %v772, %v771
    %v785 = vunpack.c.l.b16 %v725
    %v786 = vunpack.c.h.b16 %v725
    %v787 = vunpack.c.l.b16 %v726
    %v788 = vunpack.c.h.b16 %v726
    %v789 = vunpack.c.l.b16 %v727
    %v790 = vunpack.c.h.b16 %v727
    %v791 = vunpack.c.l.b16 %v728
    %v792 = vunpack.c.h.b16 %v728
    %v793 = vpack.c.b16 %v787, %v785
    %v794 = vpack.c.b16 %v788, %v786
    %v795 = vpack.c.b16 %v791, %v789
    %v796 = vpack.c.b16 %v792, %v790
    %vm801 = vcmask 261120
    %v803 = vsel %vm801, %v773, 0
    %v806 = vsel %vm801, %v774, 0
    %v809 = vsel %vm801, %v775, 0
    %v812 = vsel %vm801, %v776, 0
    %v815 = vsel %vm801, %v777, 0
    %v818 = vsel %vm801, %v778, 0
    %v821 = vsel %vm801, %v779, 0
    %v824 = vsel %vm801, %v780, 0
    %826 = vmatprep.subr.bf16.mxu0 %v794
    %827 = vmatpush1.bf16.msra.mxu0 %v793
    %828 = vmatprep.subr.bf16.mxu0 %v796
    %829 = vmatpush1.bf16.msra.mxu0 %v795
    %830 = vmatprep.subr.bf16.mxu0 0
    %831 = vmatpush1.bf16.msra.mxu0 0
    %832 = vmatprep.subr.bf16.mxu0 0
    %833 = vmatpush1.bf16.msra.mxu0 0
    %834 = vmatprep.subr.bf16.mxu0 0
    %835 = vmatpush1.bf16.msra.mxu0 0
    %836 = vmatprep.subr.bf16.mxu0 0
    %837 = vmatpush1.bf16.msra.mxu0 0
    %838 = vmatprep.subr.bf16.mxu0 0
    %839 = vmatpush1.bf16.msra.mxu0 0
    %840 = vmatprep.subr.bf16.mxu0 0
    %841 = vmatpush1.bf16.msra.mxu0 0
    %842 = vmatprep.subr.bf16.mxu0 0
    %843 = vmatpush1.bf16.msra.mxu0 0
    %844 = vmatprep.subr.bf16.mxu0 0
    %845 = vmatpush1.bf16.msra.mxu0 0
    %846 = vmatprep.subr.bf16.mxu0 0
    %847 = vmatpush1.bf16.msra.mxu0 0
    %848 = vmatprep.subr.bf16.mxu0 0
    %849 = vmatpush1.bf16.msra.mxu0 0
    %850 = vmatprep.subr.bf16.mxu0 0
    %851 = vmatpush1.bf16.msra.mxu0 0
    %852 = vmatprep.subr.bf16.mxu0 0
    %853 = vmatpush1.bf16.msra.mxu0 0
    %854 = vmatprep.subr.bf16.mxu0 0
    %855 = vmatpush1.bf16.msra.mxu0 0
    %856 = vmatprep.subr.bf16.mxu0 0
    %857 = vmatpush1.bf16.msra.mxu0 0
    %858 = vmatprep.mubr.bf16.mxu0 0
    %859 = vmatmul.mubr.bf16.gmra.mrb[0].mxu0 %v803
    %v860 = vpop.f32.mrb[0].mxu0
    %v861 = vadd.f32 %v734, %v860
    %v862 = vpop.f32.mrb[0].mxu0
    %v863 = vadd.f32 %v738, %v862
    %v864 = vpop.f32.mrb[0].mxu0
    %v865 = vadd.f32 %v734, %v864
    %v866 = vpop.f32.mrb[0].mxu0
    %v867 = vadd.f32 %v738, %v866
    %868 = vmatprep.mubr.bf16.mxu0 0
    %869 = vmatmul.mubr.bf16.gmra.mrb[0].mxu0 %v806
    %v870 = vpop.f32.mrb[0].mxu0
    %v871 = vadd.f32 %v734, %v870
    %v872 = vpop.f32.mrb[0].mxu0
    %v873 = vadd.f32 %v738, %v872
    %v874 = vpop.f32.mrb[0].mxu0
    %v875 = vadd.f32 %v734, %v874
    %v876 = vpop.f32.mrb[0].mxu0
    %v877 = vadd.f32 %v738, %v876
    %878 = vmatprep.mubr.bf16.mxu0 0
    %879 = vmatmul.mubr.bf16.gmra.mrb[0].mxu0 %v809
    %v880 = vpop.f32.mrb[0].mxu0
    %v881 = vadd.f32 %v734, %v880
    %v882 = vpop.f32.mrb[0].mxu0
    %v883 = vadd.f32 %v738, %v882
    %v884 = vpop.f32.mrb[0].mxu0
    %v885 = vadd.f32 %v734, %v884
    %v886 = vpop.f32.mrb[0].mxu0
    %v887 = vadd.f32 %v738, %v886
    %888 = vmatprep.mubr.bf16.mxu0 0
    %889 = vmatmul.mubr.bf16.gmra.mrb[0].mxu0 %v812
    %v890 = vpop.f32.mrb[0].mxu0
    %v891 = vadd.f32 %v734, %v890
    %v892 = vpop.f32.mrb[0].mxu0
    %v893 = vadd.f32 %v738, %v892
    %v894 = vpop.f32.mrb[0].mxu0
    %v895 = vadd.f32 %v734, %v894
    %v896 = vpop.f32.mrb[0].mxu0
    %v897 = vadd.f32 %v738, %v896
    %898 = vmatprep.mubr.bf16.mxu0 0
    %899 = vmatmul.mubr.bf16.gmra.mrb[0].mxu0 %v815
    %v900 = vpop.f32.mrb[0].mxu0
    %v901 = vadd.f32 %v734, %v900
    %v902 = vpop.f32.mrb[0].mxu0
    %v903 = vadd.f32 %v738, %v902
    %v904 = vpop.f32.mrb[0].mxu0
    %v905 = vadd.f32 %v734, %v904
    %v906 = vpop.f32.mrb[0].mxu0
    %v907 = vadd.f32 %v738, %v906
    %908 = vmatprep.mubr.bf16.mxu0 0
    %909 = vmatmul.mubr.bf16.gmra.mrb[0].mxu0 %v818
    %v910 = vpop.f32.mrb[0].mxu0
    %v911 = vadd.f32 %v734, %v910
    %v912 = vpop.f32.mrb[0].mxu0
    %v913 = vadd.f32 %v738, %v912
    %v914 = vpop.f32.mrb[0].mxu0
    %v915 = vadd.f32 %v734, %v914
    %v916 = vpop.f32.mrb[0].mxu0
    %v917 = vadd.f32 %v738, %v916
    %918 = vmatprep.mubr.bf16.mxu0 0
    %919 = vmatmul.mubr.bf16.gmra.mrb[0].mxu0 %v821
    %v920 = vpop.f32.mrb[0].mxu0
    %v921 = vadd.f32 %v734, %v920
    %v922 = vpop.f32.mrb[0].mxu0
    %v923 = vadd.f32 %v738, %v922
    %v924 = vpop.f32.mrb[0].mxu0
    %v925 = vadd.f32 %v734, %v924
    %v926 = vpop.f32.mrb[0].mxu0
    %v927 = vadd.f32 %v738, %v926
    %928 = vmatprep.mubr.bf16.mxu0 0
    %929 = vmatmul.mubr.bf16.gmra.mrb[0].mxu0 %v824
    %v930 = vpop.f32.mrb[0].mxu0
    %v931 = vadd.f32 %v734, %v930
    %v932 = vpop.f32.mrb[0].mxu0
    %v933 = vadd.f32 %v738, %v932
    %v934 = vpop.f32.mrb[0].mxu0
    %v935 = vadd.f32 %v734, %v934
    %v936 = vpop.f32.mrb[0].mxu0
    %v937 = vadd.f32 %v738, %v936
    %938 = vdwg.mxu0
    %v939 = vmax.f32 %v861, 0.0
    %v940 = vmax.f32 %v863, 0.0
    %v941 = vmax.f32 %v865, 0.0
    %v942 = vmax.f32 %v867, 0.0
    %v943 = vmax.f32 %v871, 0.0
    %v944 = vmax.f32 %v873, 0.0
    %v945 = vmax.f32 %v875, 0.0
    %v946 = vmax.f32 %v877, 0.0
    %v947 = vmax.f32 %v881, 0.0
    %v948 = vmax.f32 %v883, 0.0
    %v949 = vmax.f32 %v885, 0.0
    %v950 = vmax.f32 %v887, 0.0
    %v951 = vmax.f32 %v891, 0.0
    %v952 = vmax.f32 %v893, 0.0
    %v953 = vmax.f32 %v895, 0.0
    %v954 = vmax.f32 %v897, 0.0
    %v955 = vmax.f32 %v901, 0.0
    %v956 = vmax.f32 %v903, 0.0
    %v957 = vmax.f32 %v905, 0.0
    %v958 = vmax.f32 %v907, 0.0
    %v959 = vmax.f32 %v911, 0.0
    %v960 = vmax.f32 %v913, 0.0
    %v961 = vmax.f32 %v915, 0.0
    %v962 = vmax.f32 %v917, 0.0
    %v963 = vmax.f32 %v921, 0.0
    %v964 = vmax.f32 %v923, 0.0
    %v965 = vmax.f32 %v925, 0.0
    %v966 = vmax.f32 %v927, 0.0
    %v967 = vmax.f32 %v931, 0.0
    %v968 = vmax.f32 %v933, 0.0
    %v969 = vmax.f32 %v935, 0.0
    %v970 = vmax.f32 %v937, 0.0
    %972 = vset.pattern.permute.xlu0 0
    %973 = vperm.xlu0 %972, %v694
    %v974 = vpop.permute.xlu0 %973
    %977 = vset.pattern.permute.xlu0 0
    %978 = vperm.xlu0 %977, %v696
    %v979 = vpop.permute.xlu0 %978
    %982 = vset.pattern.permute.xlu0 0
    %983 = vperm.xlu0 %982, %v698
    %v984 = vpop.permute.xlu0 %983
    %987 = vset.pattern.permute.xlu0 0
    %988 = vperm.xlu0 %987, %v700
    %v989 = vpop.permute.xlu0 %988
    %992 = vset.pattern.permute.xlu0 0
    %993 = vperm.xlu0 %992, %v702
    %v994 = vpop.permute.xlu0 %993
    %997 = vset.pattern.permute.xlu0 0
    %998 = vperm.xlu0 %997, %v704
    %v999 = vpop.permute.xlu0 %998
    %1002 = vset.pattern.permute.xlu0 0
    %1003 = vperm.xlu0 %1002, %v706
    %v1004 = vpop.permute.xlu0 %1003
    %1007 = vset.pattern.permute.xlu0 0
    %1008 = vperm.xlu0 %1007, %v708
    %v1009 = vpop.permute.xlu0 %1008
    %1012 = vset.pattern.permute.xlu0 0
    %1013 = vperm.xlu0 %1012, %v710
    %v1014 = vpop.permute.xlu0 %1013
    %1017 = vset.pattern.permute.xlu0 0
    %1018 = vperm.xlu0 %1017, %v712
    %v1019 = vpop.permute.xlu0 %1018
    %1022 = vset.pattern.permute.xlu0 0
    %1023 = vperm.xlu0 %1022, %v714
    %v1024 = vpop.permute.xlu0 %1023
    %1027 = vset.pattern.permute.xlu0 0
    %1028 = vperm.xlu0 %1027, %v716
    %v1029 = vpop.permute.xlu0 %1028
    %1032 = vset.pattern.permute.xlu0 0
    %1033 = vperm.xlu0 %1032, %v718
    %v1034 = vpop.permute.xlu0 %1033
    %1037 = vset.pattern.permute.xlu0 0
    %1038 = vperm.xlu0 %1037, %v720
    %v1039 = vpop.permute.xlu0 %1038
    %1042 = vset.pattern.permute.xlu0 0
    %1043 = vperm.xlu0 %1042, %v722
    %v1044 = vpop.permute.xlu0 %1043
    %1047 = vset.pattern.permute.xlu0 0
    %1048 = vperm.xlu0 %1047, %v724
    %v1049 = vpop.permute.xlu0 %1048
    %v1051 = vmul.f32 %v939, %v974
    %v1052 = vmul.f32 %v941, %v979
    %v1053 = vmul.f32 %v943, %v984
    %v1054 = vmul.f32 %v945, %v989
    %v1055 = vmul.f32 %v947, %v994
    %v1056 = vmul.f32 %v949, %v999
    %v1057 = vmul.f32 %v951, %v1004
    %v1058 = vmul.f32 %v953, %v1009
    %v1059 = vmul.f32 %v955, %v1014
    %v1060 = vmul.f32 %v957, %v1019
    %v1061 = vmul.f32 %v959, %v1024
    %v1062 = vmul.f32 %v961, %v1029
    %v1063 = vmul.f32 %v963, %v1034
    %v1064 = vmul.f32 %v965, %v1039
    %v1065 = vmul.f32 %v967, %v1044
    %v1066 = vmul.f32 %v969, %v1049
    %1067 = vset.pattern.permute.xlu0 1
    %1068 = vperm.xlu0 %1067, %v694
    %v1069 = vpop.permute.xlu0 %1068
    %1071 = vset.pattern.permute.xlu0 1
    %1072 = vperm.xlu0 %1071, %v696
    %v1073 = vpop.permute.xlu0 %1072
    %1075 = vset.pattern.permute.xlu0 1
    %1076 = vperm.xlu0 %1075, %v698
    %v1077 = vpop.permute.xlu0 %1076
    %1079 = vset.pattern.permute.xlu0 1
    %1080 = vperm.xlu0 %1079, %v700
    %v1081 = vpop.permute.xlu0 %1080
    %1083 = vset.pattern.permute.xlu0 1
    %1084 = vperm.xlu0 %1083, %v702
    %v1085 = vpop.permute.xlu0 %1084
    %1087 = vset.pattern.permute.xlu0 1
    %1088 = vperm.xlu0 %1087, %v704
    %v1089 = vpop.permute.xlu0 %1088
    %1091 = vset.pattern.permute.xlu0 1
    %1092 = vperm.xlu0 %1091, %v706
    %v1093 = vpop.permute.xlu0 %1092
    %1095 = vset.pattern.permute.xlu0 1
    %1096 = vperm.xlu0 %1095, %v708
    %v1097 = vpop.permute.xlu0 %1096
    %1099 = vset.pattern.permute.xlu0 1
    %1100 = vperm.xlu0 %1099, %v710
    %v1101 = vpop.permute.xlu0 %1100
    %1103 = vset.pattern.permute.xlu0 1
    %1104 = vperm.xlu0 %1103, %v712
    %v1105 = vpop.permute.xlu0 %1104
    %1107 = vset.pattern.permute.xlu0 1
    %1108 = vperm.xlu0 %1107, %v714
    %v1109 = vpop.permute.xlu0 %1108
    %1111 = vset.pattern.permute.xlu0 1
    %1112 = vperm.xlu0 %1111, %v716
    %v1113 = vpop.permute.xlu0 %1112
    %1115 = vset.pattern.permute.xlu0 1
    %1116 = vperm.xlu0 %1115, %v718
    %v1117 = vpop.permute.xlu0 %1116
    %1119 = vset.pattern.permute.xlu0 1
    %1120 = vperm.xlu0 %1119, %v720
    %v1121 = vpop.permute.xlu0 %1120
    %1123 = vset.pattern.permute.xlu0 1
    %1124 = vperm.xlu0 %1123, %v722
    %v1125 = vpop.permute.xlu0 %1124
    %1127 = vset.pattern.permute.xlu0 1
    %1128 = vperm.xlu0 %1127, %v724
    %v1129 = vpop.permute.xlu0 %1128
    %v1131 = vmul.f32 %v939, %v1069
    %v1132 = vmul.f32 %v941, %v1073
    %v1133 = vmul.f32 %v943, %v1077
    %v1134 = vmul.f32 %v945, %v1081
    %v1135 = vmul.f32 %v947, %v1085
    %v1136 = vmul.f32 %v949, %v1089
    %v1137 = vmul.f32 %v951, %v1093
    %v1138 = vmul.f32 %v953, %v1097
    %v1139 = vmul.f32 %v955, %v1101
    %v1140 = vmul.f32 %v957, %v1105
    %v1141 = vmul.f32 %v959, %v1109
    %v1142 = vmul.f32 %v961, %v1113
    %v1143 = vmul.f32 %v963, %v1117
    %v1144 = vmul.f32 %v965, %v1121
    %v1145 = vmul.f32 %v967, %v1125
    %v1146 = vmul.f32 %v969, %v1129
    %1147 = vset.pattern.permute.xlu0 2
    %1148 = vperm.xlu0 %1147, %v694
    %v1149 = vpop.permute.xlu0 %1148
    %1151 = vset.pattern.permute.xlu0 2
    %1152 = vperm.xlu0 %1151, %v696
    %v1153 = vpop.permute.xlu0 %1152
    %1155 = vset.pattern.permute.xlu0 2
    %1156 = vperm.xlu0 %1155, %v698
    %v1157 = vpop.permute.xlu0 %1156
    %1159 = vset.pattern.permute.xlu0 2
    %1160 = vperm.xlu0 %1159, %v700
    %v1161 = vpop.permute.xlu0 %1160
    %1163 = vset.pattern.permute.xlu0 2
    %1164 = vperm.xlu0 %1163, %v702
    %v1165 = vpop.permute.xlu0 %1164
    %1167 = vset.pattern.permute.xlu0 2
    %1168 = vperm.xlu0 %1167, %v704
    %v1169 = vpop.permute.xlu0 %1168
    %1171 = vset.pattern.permute.xlu0 2
    %1172 = vperm.xlu0 %1171, %v706
    %v1173 = vpop.permute.xlu0 %1172
    %1175 = vset.pattern.permute.xlu0 2
    %1176 = vperm.xlu0 %1175, %v708
    %v1177 = vpop.permute.xlu0 %1176
    %1179 = vset.pattern.permute.xlu0 2
    %1180 = vperm.xlu0 %1179, %v710
    %v1181 = vpop.permute.xlu0 %1180
    %1183 = vset.pattern.permute.xlu0 2
    %1184 = vperm.xlu0 %1183, %v712
    %v1185 = vpop.permute.xlu0 %1184
    %1187 = vset.pattern.permute.xlu0 2
    %1188 = vperm.xlu0 %1187, %v714
    %v1189 = vpop.permute.xlu0 %1188
    %1191 = vset.pattern.permute.xlu0 2
    %1192 = vperm.xlu0 %1191, %v716
    %v1193 = vpop.permute.xlu0 %1192
    %1195 = vset.pattern.permute.xlu0 2
    %1196 = vperm.xlu0 %1195, %v718
    %v1197 = vpop.permute.xlu0 %1196
    %1199 = vset.pattern.permute.xlu0 2
    %1200 = vperm.xlu0 %1199, %v720
    %v1201 = vpop.permute.xlu0 %1200
    %1203 = vset.pattern.permute.xlu0 2
    %1204 = vperm.xlu0 %1203, %v722
    %v1205 = vpop.permute.xlu0 %1204
    %1207 = vset.pattern.permute.xlu0 2
    %1208 = vperm.xlu0 %1207, %v724
    %v1209 = vpop.permute.xlu0 %1208
    %v1211 = vmul.f32 %v939, %v1149
    %v1212 = vmul.f32 %v940, %v1149
    %v1213 = vmul.f32 %v941, %v1153
    %v1214 = vmul.f32 %v942, %v1153
    %v1215 = vmul.f32 %v943, %v1157
    %v1216 = vmul.f32 %v944, %v1157
    %v1217 = vmul.f32 %v945, %v1161
    %v1218 = vmul.f32 %v946, %v1161
    %v1219 = vmul.f32 %v947, %v1165
    %v1220 = vmul.f32 %v948, %v1165
    %v1221 = vmul.f32 %v949, %v1169
    %v1222 = vmul.f32 %v950, %v1169
    %v1223 = vmul.f32 %v951, %v1173
    %v1224 = vmul.f32 %v952, %v1173
    %v1225 = vmul.f32 %v953, %v1177
    %v1226 = vmul.f32 %v954, %v1177
    %v1227 = vmul.f32 %v955, %v1181
    %v1228 = vmul.f32 %v956, %v1181
    %v1229 = vmul.f32 %v957, %v1185
    %v1230 = vmul.f32 %v958, %v1185
    %v1231 = vmul.f32 %v959, %v1189
    %v1232 = vmul.f32 %v960, %v1189
    %v1233 = vmul.f32 %v961, %v1193
    %v1234 = vmul.f32 %v962, %v1193
    %v1235 = vmul.f32 %v963, %v1197
    %v1236 = vmul.f32 %v964, %v1197
    %v1237 = vmul.f32 %v965, %v1201
    %v1238 = vmul.f32 %v966, %v1201
    %v1239 = vmul.f32 %v967, %v1205
    %v1240 = vmul.f32 %v968, %v1205
    %v1241 = vmul.f32 %v969, %v1209
    %v1242 = vmul.f32 %v970, %v1209
    %vm1243 = vcmask 392192
    %v1244 = vsel %vm1243, %v1051, %v1131
    %v1245 = vsel %vm1243, %v1052, %v1132
    %v1246 = vsel %vm1243, %v1053, %v1133
    %v1247 = vsel %vm1243, %v1054, %v1134
    %v1248 = vsel %vm1243, %v1055, %v1135
    %v1249 = vsel %vm1243, %v1056, %v1136
    %v1250 = vsel %vm1243, %v1057, %v1137
    %v1251 = vsel %vm1243, %v1058, %v1138
    %v1252 = vsel %vm1243, %v1059, %v1139
    %v1253 = vsel %vm1243, %v1060, %v1140
    %v1254 = vsel %vm1243, %v1061, %v1141
    %v1255 = vsel %vm1243, %v1062, %v1142
    %v1256 = vsel %vm1243, %v1063, %v1143
    %v1257 = vsel %vm1243, %v1064, %v1144
    %v1258 = vsel %vm1243, %v1065, %v1145
    %v1259 = vsel %vm1243, %v1066, %v1146
    %vm1260 = vcmask 785408
    %v1261 = vsel %vm1260, %v1244, %v1211
    %v1262 = vsel %vm1260, %v1245, %v1213
    %v1263 = vsel %vm1260, %v1246, %v1215
    %v1264 = vsel %vm1260, %v1247, %v1217
    %v1265 = vsel %vm1260, %v1248, %v1219
    %v1266 = vsel %vm1260, %v1249, %v1221
    %v1267 = vsel %vm1260, %v1250, %v1223
    %v1268 = vsel %vm1260, %v1251, %v1225
    %v1269 = vsel %vm1260, %v1252, %v1227
    %v1270 = vsel %vm1260, %v1253, %v1229
    %v1271 = vsel %vm1260, %v1254, %v1231
    %v1272 = vsel %vm1260, %v1255, %v1233
    %v1273 = vsel %vm1260, %v1256, %v1235
    %v1274 = vsel %vm1260, %v1257, %v1237
    %v1275 = vsel %vm1260, %v1258, %v1239
    %v1276 = vsel %vm1260, %v1259, %v1241
    %v1277 = vpack.c.bf16 %v1262, %v1261
    %v1278 = vpack.c.bf16 %v1214, %v1212
    %v1279 = vpack.c.bf16 %v1264, %v1263
    %v1280 = vpack.c.bf16 %v1218, %v1216
    %v1281 = vpack.c.bf16 %v1266, %v1265
    %v1282 = vpack.c.bf16 %v1222, %v1220
    %v1283 = vpack.c.bf16 %v1268, %v1267
    %v1284 = vpack.c.bf16 %v1226, %v1224
    %v1285 = vpack.c.bf16 %v1270, %v1269
    %v1286 = vpack.c.bf16 %v1230, %v1228
    %v1287 = vpack.c.bf16 %v1272, %v1271
    %v1288 = vpack.c.bf16 %v1234, %v1232
    %v1289 = vpack.c.bf16 %v1274, %v1273
    %v1290 = vpack.c.bf16 %v1238, %v1236
    %v1291 = vpack.c.bf16 %v1276, %v1275
    %v1292 = vpack.c.bf16 %v1242, %v1240
    %v1293 = vld [vmem:[%s7] sm:$0xf]
    %v1294 = vld [vmem:[%s7 + $0x4] sm:$0xf]
    %v1295 = vld [vmem:[%s7 + $0x8] sm:$0xf]
    %v1296 = vld [vmem:[%s7 + $0xc] sm:$0xf]
    %v1297 = vld [vmem:[%s7 + $0x10] sm:$0xf]
    %v1298 = vld [vmem:[%s7 + $0x14] sm:$0xf]
    %v1299 = vld [vmem:[%s7 + $0x18] sm:$0xf]
    %v1300 = vld [vmem:[%s7 + $0x1c] sm:$0xf]
    %v1301 = vld [vmem:[%s7 + $0x20] sm:$0xf]
    %v1302 = vld [vmem:[%s7 + $0x24] sm:$0xf]
    %v1303 = vld [vmem:[%s7 + $0x28] sm:$0xf]
    %v1304 = vld [vmem:[%s7 + $0x2c] sm:$0xf]
    %v1305 = vld [vmem:[%s7 + $0x30] sm:$0xf]
    %v1306 = vld [vmem:[%s7 + $0x34] sm:$0xf]
    %v1307 = vld [vmem:[%s7 + $0x38] sm:$0xf]
    %v1308 = vld [vmem:[%s7 + $0x3c] sm:$0xf]
    %v1309 = vld [vmem:[%s7 + $0x40] sm:$0xf]
    %v1310 = vld [vmem:[%s7 + $0x44] sm:$0xf]
    %v1311 = vld [vmem:[%s8] sm:$0x7]
    %v1312 = vsel %vm235, %v694, 0
    %v1314 = vsel %vm235, %v696, 0
    %v1316 = vsel %vm235, %v698, 0
    %v1318 = vsel %vm235, %v700, 0
    %v1320 = vsel %vm235, %v702, 0
    %v1322 = vsel %vm235, %v704, 0
    %v1324 = vsel %vm235, %v706, 0
    %v1326 = vsel %vm235, %v708, 0
    %v1328 = vsel %vm235, %v710, 0
    %v1330 = vsel %vm235, %v712, 0
    %v1332 = vsel %vm235, %v714, 0
    %v1334 = vsel %vm235, %v716, 0
    %v1336 = vsel %vm235, %v718, 0
    %v1338 = vsel %vm235, %v720, 0
    %v1340 = vsel %vm235, %v722, 0
    %v1342 = vsel %vm235, %v724, 0
    %vm1344 = vcmask 1042432
    %v1346 = vsel %vm1344, %v1311, 0
    %1348 = vmatprep.subr.mxu0 0.0
    %1349 = vmatpush1.msra.mxu0 %v1346
    %1350 = vmatprep.subr.mxu0 0.0
    %1351 = vmatpush1.msra.mxu0 0.0
    %1352 = vmatprep.subr.mxu0 0.0
    %1353 = vmatpush1.msra.mxu0 0.0
    %1354 = vmatprep.subr.mxu0 0.0
    %1355 = vmatpush1.msra.mxu0 0.0
    %1356 = vmatprep.subr.mxu0 0.0
    %1357 = vmatpush1.msra.mxu0 0.0
    %1358 = vmatprep.subr.mxu0 0.0
    %1359 = vmatpush1.msra.mxu0 0.0
    %1360 = vmatprep.subr.mxu0 0.0
    %1361 = vmatpush1.msra.mxu0 0.0
    %1362 = vmatprep.subr.mxu0 0.0
    %1363 = vmatpush1.msra.mxu0 0.0
    %1364 = vmatprep.subr.mxu0 0.0
    %1365 = vmatpush1.msra.mxu0 0.0
    %1366 = vmatprep.subr.mxu0 0.0
    %1367 = vmatpush1.msra.mxu0 0.0
    %1368 = vmatprep.subr.mxu0 0.0
    %1369 = vmatpush1.msra.mxu0 0.0
    %1370 = vmatprep.subr.mxu0 0.0
    %1371 = vmatpush1.msra.mxu0 0.0
    %1372 = vmatprep.subr.mxu0 0.0
    %1373 = vmatpush1.msra.mxu0 0.0
    %1374 = vmatprep.subr.mxu0 0.0
    %1375 = vmatpush1.msra.mxu0 0.0
    %1376 = vmatprep.subr.mxu0 0.0
    %1377 = vmatpush1.msra.mxu0 0.0
    %1378 = vmatprep.subr.mxu0 0.0
    %1379 = vmatpush1.msra.mxu0 0.0
    %1380 = vmatprep.subr.mxu0 0.0
    %1381 = vmatpush1.msra.mxu0 0.0
    %1382 = vmatprep.subr.mxu0 0.0
    %1383 = vmatpush1.msra.mxu0 0.0
    %1384 = vmatprep.subr.mxu0 0.0
    %1385 = vmatpush1.msra.mxu0 0.0
    %1386 = vmatprep.subr.mxu0 0.0
    %1387 = vmatpush1.msra.mxu0 0.0
    %1388 = vmatprep.subr.mxu0 0.0
    %1389 = vmatpush1.msra.mxu0 0.0
    %1390 = vmatprep.subr.mxu0 0.0
    %1391 = vmatpush1.msra.mxu0 0.0
    %1392 = vmatprep.subr.mxu0 0.0
    %1393 = vmatpush1.msra.mxu0 0.0
    %1394 = vmatprep.subr.mxu0 0.0
    %1395 = vmatpush1.msra.mxu0 0.0
    %1396 = vmatprep.subr.mxu0 0.0
    %1397 = vmatpush1.msra.mxu0 0.0
    %1398 = vmatprep.subr.mxu0 0.0
    %1399 = vmatpush1.msra.mxu0 0.0
    %1400 = vmatprep.subr.mxu0 0.0
    %1401 = vmatpush1.msra.mxu0 0.0
    %1402 = vmatprep.subr.mxu0 0.0
    %1403 = vmatpush1.msra.mxu0 0.0
    %1404 = vmatprep.subr.mxu0 0.0
    %1405 = vmatpush1.msra.mxu0 0.0
    %1406 = vmatprep.subr.mxu0 0.0
    %1407 = vmatpush1.msra.mxu0 0.0
    %1408 = vmatprep.subr.mxu0 0.0
    %1409 = vmatpush1.msra.mxu0 0.0
    %1410 = vmatprep.subr.mxu0 0.0
    %1411 = vmatpush1.msra.mxu0 0.0
    %1412 = vmatprep.mubr.f32.mxu0 0.0
    %1413 = vmatmul.mubr.f32.gmra.mrb[0].mxu0 %v1312
    %v1414 = vpop.f32.mrb[0].mxu0
    %v1415 = vadd.f32 0.0, %v1414
    %v1416 = vpop.f32.mrb[0].mxu0
    %1417 = vmatprep.mubr.f32.mxu0 0.0
    %1418 = vmatmul.mubr.f32.gmra.mrb[0].mxu0 %v1314
    %v1419 = vpop.f32.mrb[0].mxu0
    %v1420 = vadd.f32 0.0, %v1419
    %v1421 = vpop.f32.mrb[0].mxu0
    %1422 = vmatprep.mubr.f32.mxu0 0.0
    %1423 = vmatmul.mubr.f32.gmra.mrb[0].mxu0 %v1316
    %v1424 = vpop.f32.mrb[0].mxu0
    %v1425 = vadd.f32 0.0, %v1424
    %v1426 = vpop.f32.mrb[0].mxu0
    %1427 = vmatprep.mubr.f32.mxu0 0.0
    %1428 = vmatmul.mubr.f32.gmra.mrb[0].mxu0 %v1318
    %v1429 = vpop.f32.mrb[0].mxu0
    %v1430 = vadd.f32 0.0, %v1429
    %v1431 = vpop.f32.mrb[0].mxu0
    %1432 = vmatprep.mubr.f32.mxu0 0.0
    %1433 = vmatmul.mubr.f32.gmra.mrb[0].mxu0 %v1320
    %v1434 = vpop.f32.mrb[0].mxu0
    %v1435 = vadd.f32 0.0, %v1434
    %v1436 = vpop.f32.mrb[0].mxu0
    %1437 = vmatprep.mubr.f32.mxu0 0.0
    %1438 = vmatmul.mubr.f32.gmra.mrb[0].mxu0 %v1322
    %v1439 = vpop.f32.mrb[0].mxu0
    %v1440 = vadd.f32 0.0, %v1439
    %v1441 = vpop.f32.mrb[0].mxu0
    %1442 = vmatprep.mubr.f32.mxu0 0.0
    %1443 = vmatmul.mubr.f32.gmra.mrb[0].mxu0 %v1324
    %v1444 = vpop.f32.mrb[0].mxu0
    %v1445 = vadd.f32 0.0, %v1444
    %v1446 = vpop.f32.mrb[0].mxu0
    %1447 = vmatprep.mubr.f32.mxu0 0.0
    %1448 = vmatmul.mubr.f32.gmra.mrb[0].mxu0 %v1326
    %v1449 = vpop.f32.mrb[0].mxu0
    %v1450 = vadd.f32 0.0, %v1449
    %v1451 = vpop.f32.mrb[0].mxu0
    %1452 = vmatprep.mubr.f32.mxu0 0.0
    %1453 = vmatmul.mubr.f32.gmra.mrb[0].mxu0 %v1328
    %v1454 = vpop.f32.mrb[0].mxu0
    %v1455 = vadd.f32 0.0, %v1454
    %v1456 = vpop.f32.mrb[0].mxu0
    %1457 = vmatprep.mubr.f32.mxu0 0.0
    %1458 = vmatmul.mubr.f32.gmra.mrb[0].mxu0 %v1330
    %v1459 = vpop.f32.mrb[0].mxu0
    %v1460 = vadd.f32 0.0, %v1459
    %v1461 = vpop.f32.mrb[0].mxu0
    %1462 = vmatprep.mubr.f32.mxu0 0.0
    %1463 = vmatmul.mubr.f32.gmra.mrb[0].mxu0 %v1332
    %v1464 = vpop.f32.mrb[0].mxu0
    %v1465 = vadd.f32 0.0, %v1464
    %v1466 = vpop.f32.mrb[0].mxu0
    %1467 = vmatprep.mubr.f32.mxu0 0.0
    %1468 = vmatmul.mubr.f32.gmra.mrb[0].mxu0 %v1334
    %v1469 = vpop.f32.mrb[0].mxu0
    %v1470 = vadd.f32 0.0, %v1469
    %v1471 = vpop.f32.mrb[0].mxu0
    %1472 = vmatprep.mubr.f32.mxu0 0.0
    %1473 = vmatmul.mubr.f32.gmra.mrb[0].mxu0 %v1336
    %v1474 = vpop.f32.mrb[0].mxu0
    %v1475 = vadd.f32 0.0, %v1474
    %v1476 = vpop.f32.mrb[0].mxu0
    %1477 = vmatprep.mubr.f32.mxu0 0.0
    %1478 = vmatmul.mubr.f32.gmra.mrb[0].mxu0 %v1338
    %v1479 = vpop.f32.mrb[0].mxu0
    %v1480 = vadd.f32 0.0, %v1479
    %v1481 = vpop.f32.mrb[0].mxu0
    %1482 = vmatprep.mubr.f32.mxu0 0.0
    %1483 = vmatmul.mubr.f32.gmra.mrb[0].mxu0 %v1340
    %v1484 = vpop.f32.mrb[0].mxu0
    %v1485 = vadd.f32 0.0, %v1484
    %v1486 = vpop.f32.mrb[0].mxu0
    %1487 = vmatprep.mubr.f32.mxu0 0.0
    %1488 = vmatmul.mubr.f32.gmra.mrb[0].mxu0 %v1342
    %v1489 = vpop.f32.mrb[0].mxu0
    %v1490 = vadd.f32 0.0, %v1489
    %v1491 = vpop.f32.mrb[0].mxu0
    %1492 = vdwg.mxu0
    %v1511 = vunpack.c.l.b16 %v1293
    %v1512 = vunpack.c.l.b16 %v1294
    %v1513 = vunpack.c.l.b16 %v1295
    %v1514 = vunpack.c.l.b16 %v1296
    %v1515 = vunpack.c.l.b16 %v1297
    %v1516 = vunpack.c.l.b16 %v1298
    %v1517 = vunpack.c.l.b16 %v1299
    %v1518 = vunpack.c.l.b16 %v1300
    %v1519 = vunpack.c.l.b16 %v1301
    %v1520 = vunpack.c.l.b16 %v1302
    %v1521 = vunpack.c.l.b16 %v1303
    %v1522 = vunpack.c.l.b16 %v1304
    %v1523 = vunpack.c.l.b16 %v1305
    %v1524 = vunpack.c.l.b16 %v1306
    %v1525 = vunpack.c.l.b16 %v1307
    %v1526 = vunpack.c.l.b16 %v1308
    %v1527 = vunpack.c.l.b16 %v1309
    %v1528 = vunpack.c.l.b16 %v1310
    %v1529 = vpack.c.b16 %v1512, %v1511
    %v1530 = vpack.c.b16 %v1514, %v1513
    %v1531 = vpack.c.b16 %v1516, %v1515
    %v1532 = vpack.c.b16 %v1518, %v1517
    %v1533 = vpack.c.b16 %v1520, %v1519
    %v1534 = vpack.c.b16 %v1522, %v1521
    %v1535 = vpack.c.b16 %v1524, %v1523
    %v1536 = vpack.c.b16 %v1526, %v1525
    %v1537 = vpack.c.b16 %v1528, %v1527
    %vm1547 = vcmask 130048
    %v1549 = vsel %vm1547, %v1278, 0
    %v1552 = vsel %vm1547, %v1280, 0
    %v1555 = vsel %vm1547, %v1282, 0
    %v1558 = vsel %vm1547, %v1284, 0
    %v1561 = vsel %vm1547, %v1286, 0
    %v1564 = vsel %vm1547, %v1288, 0
    %v1567 = vsel %vm1547, %v1290, 0
    %v1570 = vsel %vm1547, %v1292, 0
    %1572 = vmatprep.subr.bf16.mxu0 0
    %1573 = vmatpush1.bf16.msra.mxu0 %v1529
    %1574 = vmatprep.subr.bf16.mxu0 0
    %1575 = vmatpush1.bf16.msra.mxu0 %v1530
    %1576 = vmatprep.subr.bf16.mxu0 0
    %1577 = vmatpush1.bf16.msra.mxu0 %v1531
    %1578 = vmatprep.subr.bf16.mxu0 0
    %1579 = vmatpush1.bf16.msra.mxu0 %v1532
    %1580 = vmatprep.subr.bf16.mxu0 0
    %1581 = vmatpush1.bf16.msra.mxu0 %v1533
    %1582 = vmatprep.subr.bf16.mxu0 0
    %1583 = vmatpush1.bf16.msra.mxu0 %v1534
    %1584 = vmatprep.subr.bf16.mxu0 0
    %1585 = vmatpush1.bf16.msra.mxu0 %v1535
    %1586 = vmatprep.subr.bf16.mxu0 0
    %1587 = vmatpush1.bf16.msra.mxu0 %v1536
    %1588 = vmatprep.subr.bf16.mxu0 0
    %1589 = vmatpush1.bf16.msra.mxu0 %v1537
    %1590 = vmatprep.subr.bf16.mxu0 0
    %1591 = vmatpush1.bf16.msra.mxu0 0
    %1592 = vmatprep.subr.bf16.mxu0 0
    %1593 = vmatpush1.bf16.msra.mxu0 0
    %1594 = vmatprep.subr.bf16.mxu0 0
    %1595 = vmatpush1.bf16.msra.mxu0 0
    %1596 = vmatprep.subr.bf16.mxu0 0
    %1597 = vmatpush1.bf16.msra.mxu0 0
    %1598 = vmatprep.subr.bf16.mxu0 0
    %1599 = vmatpush1.bf16.msra.mxu0 0
    %1600 = vmatprep.subr.bf16.mxu0 0
    %1601 = vmatpush1.bf16.msra.mxu0 0
    %1602 = vmatprep.subr.bf16.mxu0 0
    %1603 = vmatpush1.bf16.msra.mxu0 0
    %1604 = vmatprep.mubr.bf16.mxu0 %v1549
    %1605 = vmatmul.mubr.bf16.gmra.mrb[0].mxu0 %v1277
    %v1606 = vpop.f32.mrb[0].mxu0
    %v1607 = vadd.f32 %v1415, %v1606
    %v1608 = vpop.f32.mrb[0].mxu0
    %v1609 = vpop.f32.mrb[0].mxu0
    %v1610 = vadd.f32 %v1420, %v1609
    %v1611 = vpop.f32.mrb[0].mxu0
    %1612 = vmatprep.mubr.bf16.mxu0 %v1552
    %1613 = vmatmul.mubr.bf16.gmra.mrb[0].mxu0 %v1279
    %v1614 = vpop.f32.mrb[0].mxu0
    %v1615 = vadd.f32 %v1425, %v1614
    %v1616 = vpop.f32.mrb[0].mxu0
    %v1617 = vpop.f32.mrb[0].mxu0
    %v1618 = vadd.f32 %v1430, %v1617
    %v1619 = vpop.f32.mrb[0].mxu0
    %1620 = vmatprep.mubr.bf16.mxu0 %v1555
    %1621 = vmatmul.mubr.bf16.gmra.mrb[0].mxu0 %v1281
    %v1622 = vpop.f32.mrb[0].mxu0
    %v1623 = vadd.f32 %v1435, %v1622
    %v1624 = vpop.f32.mrb[0].mxu0
    %v1625 = vpop.f32.mrb[0].mxu0
    %v1626 = vadd.f32 %v1440, %v1625
    %v1627 = vpop.f32.mrb[0].mxu0
    %1628 = vmatprep.mubr.bf16.mxu0 %v1558
    %1629 = vmatmul.mubr.bf16.gmra.mrb[0].mxu0 %v1283
    %v1630 = vpop.f32.mrb[0].mxu0
    %v1631 = vadd.f32 %v1445, %v1630
    %v1632 = vpop.f32.mrb[0].mxu0
    %v1633 = vpop.f32.mrb[0].mxu0
    %v1634 = vadd.f32 %v1450, %v1633
    %v1635 = vpop.f32.mrb[0].mxu0
    %1636 = vmatprep.mubr.bf16.mxu0 %v1561
    %1637 = vmatmul.mubr.bf16.gmra.mrb[0].mxu0 %v1285
    %v1638 = vpop.f32.mrb[0].mxu0
    %v1639 = vadd.f32 %v1455, %v1638
    %v1640 = vpop.f32.mrb[0].mxu0
    %v1641 = vpop.f32.mrb[0].mxu0
    %v1642 = vadd.f32 %v1460, %v1641
    %v1643 = vpop.f32.mrb[0].mxu0
    %1644 = vmatprep.mubr.bf16.mxu0 %v1564
    %1645 = vmatmul.mubr.bf16.gmra.mrb[0].mxu0 %v1287
    %v1646 = vpop.f32.mrb[0].mxu0
    %v1647 = vadd.f32 %v1465, %v1646
    %v1648 = vpop.f32.mrb[0].mxu0
    %v1649 = vpop.f32.mrb[0].mxu0
    %v1650 = vadd.f32 %v1470, %v1649
    %v1651 = vpop.f32.mrb[0].mxu0
    %1652 = vmatprep.mubr.bf16.mxu0 %v1567
    %1653 = vmatmul.mubr.bf16.gmra.mrb[0].mxu0 %v1289
    %v1654 = vpop.f32.mrb[0].mxu0
    %v1655 = vadd.f32 %v1475, %v1654
    %v1656 = vpop.f32.mrb[0].mxu0
    %v1657 = vpop.f32.mrb[0].mxu0
    %v1658 = vadd.f32 %v1480, %v1657
    %v1659 = vpop.f32.mrb[0].mxu0
    %1660 = vmatprep.mubr.bf16.mxu0 %v1570
    %1661 = vmatmul.mubr.bf16.gmra.mrb[0].mxu0 %v1291
    %v1662 = vpop.f32.mrb[0].mxu0
    %v1663 = vadd.f32 %v1485, %v1662
    %v1664 = vpop.f32.mrb[0].mxu0
    %v1665 = vpop.f32.mrb[0].mxu0
    %v1666 = vadd.f32 %v1490, %v1665
    %v1667 = vpop.f32.mrb[0].mxu0
    %1668 = vdwg.mxu0
    %v1669 = vsub.f32 %v34, %v1607
    %v1670 = vsub.f32 %v35, %v1610
    %v1671 = vsub.f32 %v36, %v1615
    %v1672 = vsub.f32 %v37, %v1618
    %v1673 = vsub.f32 %v38, %v1623
    %v1674 = vsub.f32 %v39, %v1626
    %v1675 = vsub.f32 %v40, %v1631
    %v1676 = vsub.f32 %v41, %v1634
    %v1677 = vsub.f32 %v42, %v1639
    %v1678 = vsub.f32 %v43, %v1642
    %v1679 = vsub.f32 %v44, %v1647
    %v1680 = vsub.f32 %v45, %v1650
    %v1681 = vsub.f32 %v46, %v1655
    %v1682 = vsub.f32 %v47, %v1658
    %v1683 = vsub.f32 %v48, %v1663
    %v1684 = vsub.f32 %v49, %v1666
    %v1685 = vmul.f32 %v1669, %v1669
    %v1686 = vmul.f32 %v1670, %v1670
    %v1687 = vmul.f32 %v1671, %v1671
    %v1688 = vmul.f32 %v1672, %v1672
    %v1689 = vmul.f32 %v1673, %v1673
    %v1690 = vmul.f32 %v1674, %v1674
    %v1691 = vmul.f32 %v1675, %v1675
    %v1692 = vmul.f32 %v1676, %v1676
    %v1693 = vmul.f32 %v1677, %v1677
    %v1694 = vmul.f32 %v1678, %v1678
    %v1695 = vmul.f32 %v1679, %v1679
    %v1696 = vmul.f32 %v1680, %v1680
    %v1697 = vmul.f32 %v1681, %v1681
    %v1698 = vmul.f32 %v1682, %v1682
    %v1699 = vmul.f32 %v1683, %v1683
    %v1700 = vmul.f32 %v1684, %v1684
    %v1701 = vsel %vm113, %v1685, 0.0
    %v1702 = vsel %vm113, %v1686, 0.0
    %v1703 = vadd.f32 %v1701, %v1702
    %v1704 = vsel %vm113, %v1687, 0.0
    %v1705 = vadd.f32 %v1703, %v1704
    %v1706 = vsel %vm113, %v1688, 0.0
    %v1707 = vadd.f32 %v1705, %v1706
    %v1708 = vsel %vm113, %v1689, 0.0
    %v1709 = vadd.f32 %v1707, %v1708
    %v1710 = vsel %vm113, %v1690, 0.0
    %v1711 = vadd.f32 %v1709, %v1710
    %v1712 = vsel %vm113, %v1691, 0.0
    %v1713 = vadd.f32 %v1711, %v1712
    %v1714 = vsel %vm113, %v1692, 0.0
    %v1715 = vadd.f32 %v1713, %v1714
    %v1716 = vsel %vm113, %v1693, 0.0
    %v1717 = vadd.f32 %v1715, %v1716
    %v1718 = vsel %vm113, %v1694, 0.0
    %v1719 = vadd.f32 %v1717, %v1718
    %v1720 = vsel %vm113, %v1695, 0.0
    %v1721 = vadd.f32 %v1719, %v1720
    %v1722 = vsel %vm113, %v1696, 0.0
    %v1723 = vadd.f32 %v1721, %v1722
    %v1724 = vsel %vm113, %v1697, 0.0
    %v1725 = vadd.f32 %v1723, %v1724
    %v1726 = vsel %vm113, %v1698, 0.0
    %v1727 = vadd.f32 %v1725, %v1726
    %v1728 = vsel %vm113, %v1699, 0.0
    %v1729 = vadd.f32 %v1727, %v1728
    %v1730 = vsel %vm113, %v1700, 0.0
    %v1731 = vadd.f32 %v1729, %v1730
    %1732 = vadd.xlane.f32.xlu0 %v1731
    %v1733 = vpop.xlane.xlu0 %1732
    %v1734 = vrot.slane %v1733, 4
    %v1735 = vadd.f32 %v1733, %v1734
    %v1736 = vrot.slane %v1735, 2
    %v1737 = vadd.f32 %v1735, %v1736
    %v1738 = vrot.slane %v1737, 1
    %v1739 = vadd.f32 %v1737, %v1738
    %s1740 = vtos %v1739
    %v1741 = vstv %s1740
    %v1742 = vadd.f32 %v1741, 0.0
    %1743 = vst [vmem:[#allocation2] sm:$0xff] %v1742
    // Predicated region
    $region38: #{tpu_custom_call.1} parent=1 // pred_check
      _
    $region39: #{tpu_custom_call.1} parent=1 // pred_check_branch
      %1745 = sbr.rel (0) target = $region41
    $region40: #{tpu_custom_call.1} parent=1 // pred_region
      %s1747 = ssub.s32 128, 128
      %1748 = vsyncadd [#allocation3], %s1747
      %s1750 = sshll.u32 [#allocation2], 4
      %s1751 = int_to_ptr.vmem [resolvable:$true] %s1750
      %1753 = dma.vmem_to_hbm [thread:$0]  %s1751, 128, %s9, [#allocation3]
    $region41: #{tpu_custom_call.1} parent=1 // pred_fallthru
      _
    // Predicated region
    $region42: #{tpu_custom_call.1} parent=1 // pred_check
      _
    $region43: #{tpu_custom_call.1} parent=1 // pred_check_branch
      %1755 = sbr.rel (0) target = $region45
    $region44: #{tpu_custom_call.1} parent=1 // pred_region
      %1756 = dma.done [#allocation3], 128
    $region45: #{tpu_custom_call.1} parent=1 // pred_fallthru
      _
    %1757 = vsyncpa [#allocation3], 1

</llo_original>
